<compile_context>
chip_gen: v7x
topology: tpu7x:2x2x1
jax: 0.10.0
libtpu: 0.0.40
codegen_flags: <defaults>
</compile_context>

<pallas_src>
import functools

import jax
import jax.numpy as jnp
from jax.experimental import pallas as pl
from jax.experimental.pallas import tpu as pltpu


def _round_up(n, m):
    return ((n + m - 1) // m) * m


def _cdiv(a, b):
    return (a + b - 1) // b


def _device_kind():
    try:
        return jax.devices()[0].device_kind.lower()
    except Exception:
        return ""


def _default_epilogue_dtype(use_bf16):
    """bf16 bias-add/ReLU only where the VPU has a bf16 path (v6e, v7x);
    v5e (and older) keep the f32 epilogue."""
    if not use_bf16:
        return jnp.float32
    kind = _device_kind()
    if ("v6" in kind) or ("v7" in kind) or ("tpu7" in kind):
        return jnp.bfloat16
    return jnp.float32


def _num_tensorcores():
    kind = _device_kind()
    if ("v7" in kind) or ("tpu7" in kind) or ("v4" in kind):
        return 2
    return 1


def _choose_batch_tiling(B, batch_tile, num_cores):
    """Tile-count-first sizing: bounds padded-row waste to <16 rows per tile
    and keeps the grid a multiple of the TensorCore count when B allows."""
    n_tiles = max(1, _cdiv(B, batch_tile))
    if num_cores > 1 and B >= 16 * num_cores:
        n_tiles = _round_up(n_tiles, num_cores)
    bt = max(16, _round_up(_cdiv(B, n_tiles), 16))
    n_tiles = _cdiv(B, bt)
    if num_cores > 1 and n_tiles > 1:
        n_tiles = _round_up(n_tiles, num_cores)
    return bt, n_tiles, n_tiles * bt


def _mlp_kernel(x_ref,
                w1_ref, b1_ref,
                w2_ref, b2_ref,
                w3_ref, b3_ref,
                w4_ref, b4_ref,
                o_ref, *, n_sub):
    cdt = w1_ref.dtype           # matmul-input dtype (bf16 or f32)
    ep = b1_ref.dtype            # epilogue dtype for the hidden layers
    bt = x_ref.shape[0]
    sub = bt // n_sub

    def stack(x):
        # fc1..fc3: x @ W + b, ReLU.  MXU accumulates in f32; bias-add + ReLU
        # run in `ep` (bf16 on v6e/v7x, f32 on v5e).
        h = jnp.dot(x, w1_ref[...], preferred_element_type=jnp.float32)
        h = jnp.maximum(h.astype(ep) + b1_ref[...], 0.0).astype(cdt)
        h = jnp.dot(h, w2_ref[...], preferred_element_type=jnp.float32)
        h = jnp.maximum(h.astype(ep) + b2_ref[...], 0.0).astype(cdt)
        h = jnp.dot(h, w3_ref[...], preferred_element_type=jnp.float32)
        h = jnp.maximum(h.astype(ep) + b3_ref[...], 0.0).astype(cdt)
        # fc4: no activation; bias add in f32, lane-dense padded store.
        o = jnp.dot(h, w4_ref[...], preferred_element_type=jnp.float32)
        return (o + b4_ref[...]).astype(o_ref.dtype)

    if n_sub == 1:
        o_ref[...] = stack(x_ref[...])
    else:
        # Independent half-M sub-tiles in straight-line code: the LLO
        # scheduler can fill one sub-tile's MXU slots with the other's VPU
        # epilogue in the same bundles.
        for s in range(n_sub):
            rows = pl.ds(s * sub, sub)   # static, sublane-aligned slices
            o_ref[rows, :] = stack(x_ref[rows, :])


def gene_predictor_forward(x, params, *, batch_tile=512, use_bf16=True,
                           single_buffer_weights=True):
    """Fused forward pass of GenePredictorNN.

    x: (B, input_size) f32.  params: w{i}: (in, out), b{i}: (1, out), i=1..4
    (weights already transposed relative to torch).  use_bf16=False runs f32
    matmuls everywhere (exact module semantics; much slower, esp. on v5e).
    """
    B, in_dim = x.shape
    out_dim = params["w4"].shape[1]

    num_cores = _num_tensorcores()
    bt, n_tiles, B_pad = _choose_batch_tiling(B, batch_tile, num_cores)
    n_sub = 2 if (bt >= 256 and bt % 16 == 0) else 1

    out_pad = _round_up(out_dim, 128)        # lane-dense stores (full `vst`)

    cdt = jnp.bfloat16 if use_bf16 else jnp.float32
    ep = _default_epilogue_dtype(use_bf16)

    xp = x
    if B_pad != B:
        xp = jnp.pad(x, ((0, B_pad - B), (0, 0)))
    xp = xp.astype(cdt)

    w1 = params["w1"].astype(cdt)
    w2 = params["w2"].astype(cdt)
    w3 = params["w3"].astype(cdt)
    b1 = params["b1"].astype(ep)
    b2 = params["b2"].astype(ep)
    b3 = params["b3"].astype(ep)
    w4 = params["w4"]
    b4 = params["b4"]
    if out_pad != out_dim:
        w4 = jnp.pad(w4, ((0, 0), (0, out_pad - out_dim)))
        b4 = jnp.pad(b4, ((0, 0), (0, out_pad - out_dim)))
    w4 = w4.astype(cdt)
    b4 = b4.astype(jnp.float32)              # final bias add stays f32

    operands = (xp, w1, b1, w2, b2, w3, b3, w4, b4)

    # Note: very large input_size would need K-tiling of fc1 (split in_dim
    # across a grid axis); not needed at these sizes since w1 + the x tile
    # fit comfortably in VMEM.

    def build(single_buffer):
        def full(arr):
            if single_buffer:
                # Constant index map -> fetched once; no need to double-buffer.
                return pl.BlockSpec(arr.shape, lambda i: (0, 0),
                                    pipeline_mode=pl.Buffered(1))
            return pl.BlockSpec(arr.shape, lambda i: (0, 0))

        return pl.pallas_call(
            functools.partial(_mlp_kernel, n_sub=n_sub),
            out_shape=jax.ShapeDtypeStruct((B_pad, out_pad), jnp.float32),
            grid_spec=pltpu.PrefetchScalarGridSpec(
                num_scalar_prefetch=0,
                grid=(n_tiles,),
                in_specs=[
                    pl.BlockSpec((bt, in_dim), lambda i: (i, 0)),
                    full(w1), full(b1),
                    full(w2), full(b2),
                    full(w3), full(b3),
                    full(w4), full(b4),
                ],
                out_specs=pl.BlockSpec((bt, out_pad), lambda i: (i, 0)),
            ),
            compiler_params=pltpu.CompilerParams(
                dimension_semantics=("parallel",),
                vmem_limit_bytes=32 * 1024 * 1024),
        )

    try:
        out = build(single_buffer_weights)(*operands)
    except Exception:
        if not single_buffer_weights:
            raise
        # Fallback for jax versions without Buffered(1) main-pipeline support.
        out = build(False)(*operands)

    return out[:B, :out_dim]


def init_params(key, input_size, output_size):
    """Deterministic synthetic init (PyTorch-like uniform fan-in scaling)."""
    dims = [(input_size, 512), (512, 256), (256, 128), (128, output_size)]
    params = {}
    for idx, (fan_in, fan_out) in enumerate(dims, start=1):
        key, kw, kb = jax.random.split(key, 3)
        bound = 1.0 / jnp.sqrt(fan_in)
        # stored already transposed relative to torch: (in, out)
        params[f"w{idx}"] = jax.random.uniform(
            kw, (fan_in, fan_out), jnp.float32, -bound, bound)
        params[f"b{idx}"] = jax.random.uniform(
            kb, (1, fan_out), jnp.float32, -bound, bound)
    return params


def reference_forward(x, params, *, matmul_dtype=jnp.float32,
                      epilogue_dtype=jnp.float32):
    """Plain-JAX reference.  Defaults give exact f32 module semantics;
    (bf16, bf16/f32) mirrors the kernel's casts on v6e/v7x / v5e."""
    def hidden(h, w, b):
        z = jnp.dot(h.astype(matmul_dtype), w.astype(matmul_dtype),
                    preferred_element_type=jnp.float32)
        return jnp.maximum(z.astype(epilogue_dtype) + b.astype(epilogue_dtype),
                           0.0)
    h = hidden(x, params["w1"], params["b1"])
    h = hidden(h, params["w2"], params["b2"])
    h = hidden(h, params["w3"], params["b3"])
    z = jnp.dot(h.astype(matmul_dtype), params["w4"].astype(matmul_dtype),
                preferred_element_type=jnp.float32)
    return z + params["b4"]


if __name__ == "__main__":
    key = jax.random.PRNGKey(0)
    batch, input_size, output_size = 8, 32, 16

    key, kx, kp = jax.random.split(key, 3)
    x = jax.random.normal(kx, (batch, input_size), jnp.float32)
    params = init_params(kp, input_size, output_size)

    out = gene_predictor_forward(x, params)      # bf16 matmuls, f32 accumulate
    jax.block_until_ready(out)
    assert out.shape == (batch, output_size)

    ep = _default_epilogue_dtype(True)
    # Check vs. a reference that mirrors the kernel's bf16 matmul / epilogue.
    ref_mirror = reference_forward(x, params, matmul_dtype=jnp.bfloat16,
                                   epilogue_dtype=ep)
    assert jnp.allclose(out, ref_mirror, atol=2e-2, rtol=2e-2), \
        "mismatch vs mirrored bf16 reference"
    # Loose check vs. exact f32 module semantics (bf16 quantization only).
    ref_f32 = reference_forward(x, params)
    assert jnp.allclose(out, ref_f32, atol=1e-1, rtol=5e-2), \
        "mismatch vs f32 reference"

    # Second run: awkward batch size -> multi-tile grid, tile-count-first
    # padding, and the in-kernel two-sub-tile path.
    key, kx2, kp2 = jax.random.split(key, 3)
    x2 = jax.random.normal(kx2, (600, 48), jnp.float32)
    params2 = init_params(kp2, 48, 10)
    out2 = gene_predictor_forward(x2, params2, batch_tile=512)
    jax.block_until_ready(out2)
    assert out2.shape == (600, 10)
    ref2 = reference_forward(x2, params2, matmul_dtype=jnp.bfloat16,
                             epilogue_dtype=ep)
    assert jnp.allclose(out2, ref2, atol=2e-2, rtol=2e-2), \
        "mismatch vs mirrored bf16 reference (run 2)"

    print("KERNEL_OK")
</pallas_src>

<mosaic_0001>
module attributes {stable_mosaic.version = 11 : i64} {
  func.func @_mlp_kernel(%arg0: i32, %arg1: memref<16x32xbf16, #tpu.memory_space<vmem>>, %arg2: memref<32x512xbf16, #tpu.memory_space<vmem>>, %arg3: memref<1x512xf32, #tpu.memory_space<vmem>>, %arg4: memref<512x256xbf16, #tpu.memory_space<vmem>>, %arg5: memref<1x256xf32, #tpu.memory_space<vmem>>, %arg6: memref<256x128xbf16, #tpu.memory_space<vmem>>, %arg7: memref<1x128xf32, #tpu.memory_space<vmem>>, %arg8: memref<128x128xbf16, #tpu.memory_space<vmem>>, %arg9: memref<1x128xf32, #tpu.memory_space<vmem>>, %arg10: memref<16x128xf32, #tpu.memory_space<vmem>>) attributes {dimension_semantics = [#tpu.dimension_semantics<parallel>], iteration_bounds = array<i64: 1>, scalar_prefetch = 0 : i64, scratch_operands = 0 : i64, tpu.core_type = #tpu.core_type<tc>, window_params = [{transform_indices = @transform_0, window_bounds = array<i64: 16, 32>}, {pipeline_mode = #tpu.pipeline_mode<synchronous>, transform_indices = @transform_1, window_bounds = array<i64: 32, 512>}, {pipeline_mode = #tpu.pipeline_mode<synchronous>, transform_indices = @transform_2, window_bounds = array<i64: 1, 512>}, {pipeline_mode = #tpu.pipeline_mode<synchronous>, transform_indices = @transform_3, window_bounds = array<i64: 512, 256>}, {pipeline_mode = #tpu.pipeline_mode<synchronous>, transform_indices = @transform_4, window_bounds = array<i64: 1, 256>}, {pipeline_mode = #tpu.pipeline_mode<synchronous>, transform_indices = @transform_5, window_bounds = array<i64: 256, 128>}, {pipeline_mode = #tpu.pipeline_mode<synchronous>, transform_indices = @transform_6, window_bounds = array<i64: 1, 128>}, {pipeline_mode = #tpu.pipeline_mode<synchronous>, transform_indices = @transform_7, window_bounds = array<i64: 128, 128>}, {pipeline_mode = #tpu.pipeline_mode<synchronous>, transform_indices = @transform_8, window_bounds = array<i64: 1, 128>}, {transform_indices = @transform_9, window_bounds = array<i64: 16, 128>}]} {
    %c0 = arith.constant 0 : index
    %c0_0 = arith.constant 0 : index
    %0 = vector.load %arg1[%c0, %c0_0] : memref<16x32xbf16, #tpu.memory_space<vmem>>, vector<16x32xbf16>
    %c0_1 = arith.constant 0 : index
    %c0_2 = arith.constant 0 : index
    %1 = vector.load %arg2[%c0_1, %c0_2] : memref<32x512xbf16, #tpu.memory_space<vmem>>, vector<32x512xbf16>
    %cst = arith.constant dense<0.000000e+00> : vector<16x512xf32>
    %2 = tpu.matmul %0, %1, %cst {dimension_numbers = #tpu.dot_dimension_numbers<[1], [0], [0], [1], [0, 0, 1, 1], [], []>} : vector<16x32xbf16>, vector<32x512xbf16>, vector<16x512xf32> -> vector<16x512xf32>
    %c0_3 = arith.constant 0 : index
    %c0_4 = arith.constant 0 : index
    %3 = vector.load %arg3[%c0_3, %c0_4] : memref<1x512xf32, #tpu.memory_space<vmem>>, vector<1x512xf32>
    %4 = vector.broadcast %3 : vector<1x512xf32> to vector<16x512xf32>
    %5 = arith.addf %2, %4 : vector<16x512xf32>
    %cst_5 = arith.constant 0.000000e+00 : f32
    %6 = vector.broadcast %cst_5 : f32 to vector<16x512xf32>
    %7 = arith.maximumf %5, %6 : vector<16x512xf32>
    %8 = arith.truncf %7 : vector<16x512xf32> to vector<16x512xbf16>
    %c0_6 = arith.constant 0 : index
    %c0_7 = arith.constant 0 : index
    %9 = vector.load %arg4[%c0_6, %c0_7] : memref<512x256xbf16, #tpu.memory_space<vmem>>, vector<512x256xbf16>
    %cst_8 = arith.constant dense<0.000000e+00> : vector<16x256xf32>
    %10 = tpu.matmul %8, %9, %cst_8 {dimension_numbers = #tpu.dot_dimension_numbers<[1], [0], [0], [1], [0, 0, 1, 1], [], []>} : vector<16x512xbf16>, vector<512x256xbf16>, vector<16x256xf32> -> vector<16x256xf32>
    %c0_9 = arith.constant 0 : index
    %c0_10 = arith.constant 0 : index
    %11 = vector.load %arg5[%c0_9, %c0_10] : memref<1x256xf32, #tpu.memory_space<vmem>>, vector<1x256xf32>
    %12 = vector.broadcast %11 : vector<1x256xf32> to vector<16x256xf32>
    %13 = arith.addf %10, %12 : vector<16x256xf32>
    %cst_11 = arith.constant 0.000000e+00 : f32
    %14 = vector.broadcast %cst_11 : f32 to vector<16x256xf32>
    %15 = arith.maximumf %13, %14 : vector<16x256xf32>
    %16 = arith.truncf %15 : vector<16x256xf32> to vector<16x256xbf16>
    %c0_12 = arith.constant 0 : index
    %c0_13 = arith.constant 0 : index
    %17 = vector.load %arg6[%c0_12, %c0_13] : memref<256x128xbf16, #tpu.memory_space<vmem>>, vector<256x128xbf16>
    %cst_14 = arith.constant dense<0.000000e+00> : vector<16x128xf32>
    %18 = tpu.matmul %16, %17, %cst_14 {dimension_numbers = #tpu.dot_dimension_numbers<[1], [0], [0], [1], [0, 0, 1, 1], [], []>} : vector<16x256xbf16>, vector<256x128xbf16>, vector<16x128xf32> -> vector<16x128xf32>
    %c0_15 = arith.constant 0 : index
    %c0_16 = arith.constant 0 : index
    %19 = vector.load %arg7[%c0_15, %c0_16] : memref<1x128xf32, #tpu.memory_space<vmem>>, vector<1x128xf32>
    %20 = vector.broadcast %19 : vector<1x128xf32> to vector<16x128xf32>
    %21 = arith.addf %18, %20 : vector<16x128xf32>
    %cst_17 = arith.constant 0.000000e+00 : f32
    %22 = vector.broadcast %cst_17 : f32 to vector<16x128xf32>
    %23 = arith.maximumf %21, %22 : vector<16x128xf32>
    %24 = arith.truncf %23 : vector<16x128xf32> to vector<16x128xbf16>
    %c0_18 = arith.constant 0 : index
    %c0_19 = arith.constant 0 : index
    %25 = vector.load %arg8[%c0_18, %c0_19] : memref<128x128xbf16, #tpu.memory_space<vmem>>, vector<128x128xbf16>
    %cst_20 = arith.constant dense<0.000000e+00> : vector<16x128xf32>
    %26 = tpu.matmul %24, %25, %cst_20 {dimension_numbers = #tpu.dot_dimension_numbers<[1], [0], [0], [1], [0, 0, 1, 1], [], []>} : vector<16x128xbf16>, vector<128x128xbf16>, vector<16x128xf32> -> vector<16x128xf32>
    %c0_21 = arith.constant 0 : index
    %c0_22 = arith.constant 0 : index
    %27 = vector.load %arg9[%c0_21, %c0_22] : memref<1x128xf32, #tpu.memory_space<vmem>>, vector<1x128xf32>
    %28 = vector.broadcast %27 : vector<1x128xf32> to vector<16x128xf32>
    %29 = arith.addf %26, %28 : vector<16x128xf32>
    %c0_23 = arith.constant 0 : index
    %c0_24 = arith.constant 0 : index
    %30 = vector.load %arg10[%c0_23, %c0_24] : memref<16x128xf32, #tpu.memory_space<vmem>>, vector<16x128xf32>
    tpu.vector_store %arg10[%c0_23, %c0_24], %29 {strides = array<i32>} : memref<16x128xf32, #tpu.memory_space<vmem>>, vector<16x128xf32>,
    return
  }
  func.func @transform_0(%arg0: i32) -> (i32, i32) {
    %c0_i32 = arith.constant 0 : i32
    %c0_i32_0 = arith.constant 0 : i32
    return %arg0, %c0_i32 : i32, i32
  }
  func.func @transform_1(%arg0: i32) -> (i32, i32) {
    %c0_i32 = arith.constant 0 : i32
    %c0_i32_0 = arith.constant 0 : i32
    %c0_i32_1 = arith.constant 0 : i32
    return %c0_i32, %c0_i32_0 : i32, i32
  }
  func.func @transform_2(%arg0: i32) -> (i32, i32) {
    %c0_i32 = arith.constant 0 : i32
    %c0_i32_0 = arith.constant 0 : i32
    %c0_i32_1 = arith.constant 0 : i32
    return %c0_i32, %c0_i32_0 : i32, i32
  }
  func.func @transform_3(%arg0: i32) -> (i32, i32) {
    %c0_i32 = arith.constant 0 : i32
    %c0_i32_0 = arith.constant 0 : i32
    %c0_i32_1 = arith.constant 0 : i32
    return %c0_i32, %c0_i32_0 : i32, i32
  }
  func.func @transform_4(%arg0: i32) -> (i32, i32) {
    %c0_i32 = arith.constant 0 : i32
    %c0_i32_0 = arith.constant 0 : i32
    %c0_i32_1 = arith.constant 0 : i32
    return %c0_i32, %c0_i32_0 : i32, i32
  }
  func.func @transform_5(%arg0: i32) -> (i32, i32) {
    %c0_i32 = arith.constant 0 : i32
    %c0_i32_0 = arith.constant 0 : i32
    %c0_i32_1 = arith.constant 0 : i32
    return %c0_i32, %c0_i32_0 : i32, i32
  }
  func.func @transform_6(%arg0: i32) -> (i32, i32) {
    %c0_i32 = arith.constant 0 : i32
    %c0_i32_0 = arith.constant 0 : i32
    %c0_i32_1 = arith.constant 0 : i32
    return %c0_i32, %c0_i32_0 : i32, i32
  }
  func.func @transform_7(%arg0: i32) -> (i32, i32) {
    %c0_i32 = arith.constant 0 : i32
    %c0_i32_0 = arith.constant 0 : i32
    %c0_i32_1 = arith.constant 0 : i32
    return %c0_i32, %c0_i32_0 : i32, i32
  }
  func.func @transform_8(%arg0: i32) -> (i32, i32) {
    %c0_i32 = arith.constant 0 : i32
    %c0_i32_0 = arith.constant 0 : i32
    %c0_i32_1 = arith.constant 0 : i32
    return %c0_i32, %c0_i32_0 : i32, i32
  }
  func.func @transform_9(%arg0: i32) -> (i32, i32) {
    %c0_i32 = arith.constant 0 : i32
    %c0_i32_0 = arith.constant 0 : i32
    return %arg0, %c0_i32 : i32, i32
  }
}

module attributes {stable_mosaic.version = 11 : i64} {
  func.func @_mlp_kernel(%arg0: i32, %arg1: memref<16x32xbf16, #tpu.memory_space<vmem>>, %arg2: memref<32x512xbf16, #tpu.memory_space<vmem>>, %arg3: memref<1x512xf32, #tpu.memory_space<vmem>>, %arg4: memref<512x256xbf16, #tpu.memory_space<vmem>>, %arg5: memref<1x256xf32, #tpu.memory_space<vmem>>, %arg6: memref<256x128xbf16, #tpu.memory_space<vmem>>, %arg7: memref<1x128xf32, #tpu.memory_space<vmem>>, %arg8: memref<128x128xbf16, #tpu.memory_space<vmem>>, %arg9: memref<1x128xf32, #tpu.memory_space<vmem>>, %arg10: memref<16x128xf32, #tpu.memory_space<vmem>>) attributes {dimension_semantics = [#tpu.dimension_semantics<parallel>], iteration_bounds = array<i64: 1>, scalar_prefetch = 0 : i64, scratch_operands = 0 : i64, tpu.core_type = #tpu.core_type<tc>, window_params = [{transform_indices = @transform_0, window_bounds = array<i64: 16, 32>}, {pipeline_mode = #tpu.pipeline_mode<synchronous>, transform_indices = @transform_1, window_bounds = array<i64: 32, 512>}, {pipeline_mode = #tpu.pipeline_mode<synchronous>, transform_indices = @transform_2, window_bounds = array<i64: 1, 512>}, {pipeline_mode = #tpu.pipeline_mode<synchronous>, transform_indices = @transform_3, window_bounds = array<i64: 512, 256>}, {pipeline_mode = #tpu.pipeline_mode<synchronous>, transform_indices = @transform_4, window_bounds = array<i64: 1, 256>}, {pipeline_mode = #tpu.pipeline_mode<synchronous>, transform_indices = @transform_5, window_bounds = array<i64: 256, 128>}, {pipeline_mode = #tpu.pipeline_mode<synchronous>, transform_indices = @transform_6, window_bounds = array<i64: 1, 128>}, {pipeline_mode = #tpu.pipeline_mode<synchronous>, transform_indices = @transform_7, window_bounds = array<i64: 128, 128>}, {pipeline_mode = #tpu.pipeline_mode<synchronous>, transform_indices = @transform_8, window_bounds = array<i64: 1, 128>}, {transform_indices = @transform_9, window_bounds = array<i64: 16, 128>}]} {
    %c0 = arith.constant 0 : index
    %c0_0 = arith.constant 0 : index
    %0 = vector.load %arg1[%c0, %c0_0] : memref<16x32xbf16, #tpu.memory_space<vmem>>, vector<16x32xbf16>
    %c0_1 = arith.constant 0 : index
    %c0_2 = arith.constant 0 : index
    %1 = vector.load %arg2[%c0_1, %c0_2] : memref<32x512xbf16, #tpu.memory_space<vmem>>, vector<32x512xbf16>
    %cst = arith.constant dense<0.000000e+00> : vector<16x512xf32>
    %2 = tpu.matmul %0, %1, %cst {dimension_numbers = #tpu.dot_dimension_numbers<[1], [0], [0], [1], [0, 0, 1, 1], [], []>} : vector<16x32xbf16>, vector<32x512xbf16>, vector<16x512xf32> -> vector<16x512xf32>
    %c0_3 = arith.constant 0 : index
    %c0_4 = arith.constant 0 : index
    %3 = vector.load %arg3[%c0_3, %c0_4] : memref<1x512xf32, #tpu.memory_space<vmem>>, vector<1x512xf32>
    %4 = vector.broadcast %3 : vector<1x512xf32> to vector<16x512xf32>
    %5 = arith.addf %2, %4 : vector<16x512xf32>
    %cst_5 = arith.constant 0.000000e+00 : f32
    %6 = vector.broadcast %cst_5 : f32 to vector<16x512xf32>
    %7 = arith.maximumf %5, %6 : vector<16x512xf32>
    %8 = arith.truncf %7 : vector<16x512xf32> to vector<16x512xbf16>
    %c0_6 = arith.constant 0 : index
    %c0_7 = arith.constant 0 : index
    %9 = vector.load %arg4[%c0_6, %c0_7] : memref<512x256xbf16, #tpu.memory_space<vmem>>, vector<512x256xbf16>
    %cst_8 = arith.constant dense<0.000000e+00> : vector<16x256xf32>
    %10 = tpu.matmul %8, %9, %cst_8 {dimension_numbers = #tpu.dot_dimension_numbers<[1], [0], [0], [1], [0, 0, 1, 1], [], []>} : vector<16x512xbf16>, vector<512x256xbf16>, vector<16x256xf32> -> vector<16x256xf32>
    %c0_9 = arith.constant 0 : index
    %c0_10 = arith.constant 0 : index
    %11 = vector.load %arg5[%c0_9, %c0_10] : memref<1x256xf32, #tpu.memory_space<vmem>>, vector<1x256xf32>
    %12 = vector.broadcast %11 : vector<1x256xf32> to vector<16x256xf32>
    %13 = arith.addf %10, %12 : vector<16x256xf32>
    %cst_11 = arith.constant 0.000000e+00 : f32
    %14 = vector.broadcast %cst_11 : f32 to vector<16x256xf32>
    %15 = arith.maximumf %13, %14 : vector<16x256xf32>
    %16 = arith.truncf %15 : vector<16x256xf32> to vector<16x256xbf16>
    %c0_12 = arith.constant 0 : index
    %c0_13 = arith.constant 0 : index
    %17 = vector.load %arg6[%c0_12, %c0_13] : memref<256x128xbf16, #tpu.memory_space<vmem>>, vector<256x128xbf16>
    %cst_14 = arith.constant dense<0.000000e+00> : vector<16x128xf32>
    %18 = tpu.matmul %16, %17, %cst_14 {dimension_numbers = #tpu.dot_dimension_numbers<[1], [0], [0], [1], [0, 0, 1, 1], [], []>} : vector<16x256xbf16>, vector<256x128xbf16>, vector<16x128xf32> -> vector<16x128xf32>
    %c0_15 = arith.constant 0 : index
    %c0_16 = arith.constant 0 : index
    %19 = vector.load %arg7[%c0_15, %c0_16] : memref<1x128xf32, #tpu.memory_space<vmem>>, vector<1x128xf32>
    %20 = vector.broadcast %19 : vector<1x128xf32> to vector<16x128xf32>
    %21 = arith.addf %18, %20 : vector<16x128xf32>
    %cst_17 = arith.constant 0.000000e+00 : f32
    %22 = vector.broadcast %cst_17 : f32 to vector<16x128xf32>
    %23 = arith.maximumf %21, %22 : vector<16x128xf32>
    %24 = arith.truncf %23 : vector<16x128xf32> to vector<16x128xbf16>
    %c0_18 = arith.constant 0 : index
    %c0_19 = arith.constant 0 : index
    %25 = vector.load %arg8[%c0_18, %c0_19] : memref<128x128xbf16, #tpu.memory_space<vmem>>, vector<128x128xbf16>
    %cst_20 = arith.constant dense<0.000000e+00> : vector<16x128xf32>
    %26 = tpu.matmul %24, %25, %cst_20 {dimension_numbers = #tpu.dot_dimension_numbers<[1], [0], [0], [1], [0, 0, 1, 1], [], []>} : vector<16x128xbf16>, vector<128x128xbf16>, vector<16x128xf32> -> vector<16x128xf32>
    %c0_21 = arith.constant 0 : index
    %c0_22 = arith.constant 0 : index
    %27 = vector.load %arg9[%c0_21, %c0_22] : memref<1x128xf32, #tpu.memory_space<vmem>>, vector<1x128xf32>
    %28 = vector.broadcast %27 : vector<1x128xf32> to vector<16x128xf32>
    %29 = arith.addf %26, %28 : vector<16x128xf32>
    %c0_23 = arith.constant 0 : index
    %c0_24 = arith.constant 0 : index
    %30 = vector.load %arg10[%c0_23, %c0_24] : memref<16x128xf32, #tpu.memory_space<vmem>>, vector<16x128xf32>
    tpu.vector_store %arg10[%c0_23, %c0_24], %29 {strides = array<i32>} : memref<16x128xf32, #tpu.memory_space<vmem>>, vector<16x128xf32>,
    return
  }
  func.func @transform_0(%arg0: i32) -> (i32, i32) {
    %c0_i32 = arith.constant 0 : i32
    %c0_i32_0 = arith.constant 0 : i32
    return %arg0, %c0_i32 : i32, i32
  }
  func.func @transform_1(%arg0: i32) -> (i32, i32) {
    %c0_i32 = arith.constant 0 : i32
    %c0_i32_0 = arith.constant 0 : i32
    %c0_i32_1 = arith.constant 0 : i32
    return %c0_i32, %c0_i32_0 : i32, i32
  }
  func.func @transform_2(%arg0: i32) -> (i32, i32) {
    %c0_i32 = arith.constant 0 : i32
    %c0_i32_0 = arith.constant 0 : i32
    %c0_i32_1 = arith.constant 0 : i32
    return %c0_i32, %c0_i32_0 : i32, i32
  }
  func.func @transform_3(%arg0: i32) -> (i32, i32) {
    %c0_i32 = arith.constant 0 : i32
    %c0_i32_0 = arith.constant 0 : i32
    %c0_i32_1 = arith.constant 0 : i32
    return %c0_i32, %c0_i32_0 : i32, i32
  }
  func.func @transform_4(%arg0: i32) -> (i32, i32) {
    %c0_i32 = arith.constant 0 : i32
    %c0_i32_0 = arith.constant 0 : i32
    %c0_i32_1 = arith.constant 0 : i32
    return %c0_i32, %c0_i32_0 : i32, i32
  }
  func.func @transform_5(%arg0: i32) -> (i32, i32) {
    %c0_i32 = arith.constant 0 : i32
    %c0_i32_0 = arith.constant 0 : i32
    %c0_i32_1 = arith.constant 0 : i32
    return %c0_i32, %c0_i32_0 : i32, i32
  }
  func.func @transform_6(%arg0: i32) -> (i32, i32) {
    %c0_i32 = arith.constant 0 : i32
    %c0_i32_0 = arith.constant 0 : i32
    %c0_i32_1 = arith.constant 0 : i32
    return %c0_i32, %c0_i32_0 : i32, i32
  }
  func.func @transform_7(%arg0: i32) -> (i32, i32) {
    %c0_i32 = arith.constant 0 : i32
    %c0_i32_0 = arith.constant 0 : i32
    %c0_i32_1 = arith.constant 0 : i32
    return %c0_i32, %c0_i32_0 : i32, i32
  }
  func.func @transform_8(%arg0: i32) -> (i32, i32) {
    %c0_i32 = arith.constant 0 : i32
    %c0_i32_0 = arith.constant 0 : i32
    %c0_i32_1 = arith.constant 0 : i32
    return %c0_i32, %c0_i32_0 : i32, i32
  }
  func.func @transform_9(%arg0: i32) -> (i32, i32) {
    %c0_i32 = arith.constant 0 : i32
    %c0_i32_0 = arith.constant 0 : i32
    return %arg0, %c0_i32 : i32, i32
  }
}

</mosaic_0001>

<llo_original>
// kernel: tpu_custom_call.1
$region0: #{tpu_custom_call.1}
  #allocation0 [shape = 'u32[]', space=smem, size = 0x4, offset = 0x4, fixed_abs, tag = 'smem constant byte address 0x4 - core index']
  #allocation1 [shape = 'u32[144,128]{1,0:T(1,128)}', space=vmem, size = 0x12000, scoped, tag = 'internal scratch']
  %s0 = inlined_call_operand.hbm [shape: bf16[16,32], index: 0, kind: input, shape index: {}]
  %s1 = inlined_call_operand.hbm [shape: bf16[32,512], index: 1, kind: input, shape index: {}]
  %s2 = inlined_call_operand.vmem [shape: f32[1,512], index: 2, kind: input, shape index: {}]
  %s3 = inlined_call_operand.hbm [shape: bf16[512,256], index: 3, kind: input, shape index: {}]
  %s4 = inlined_call_operand.vmem [shape: f32[1,256], index: 4, kind: input, shape index: {}]
  %s5 = inlined_call_operand.hbm [shape: bf16[256,128], index: 5, kind: input, shape index: {}]
  %s6 = inlined_call_operand.vmem [shape: f32[1,128], index: 6, kind: input, shape index: {}]
  %s7 = inlined_call_operand.hbm [shape: bf16[128,128], index: 7, kind: input, shape index: {}]
  %s8 = inlined_call_operand.vmem [shape: f32[1,128], index: 8, kind: input, shape index: {}]
  %s9 = inlined_call_operand.hbm [shape: f32[16,128], index: 9, kind: output, shape index: {}]
  %s10 = sld [smem:[#allocation0]]
  $region66: #{tpu_custom_call.1} parent=0
    _
  %s12 = ssub.s32 1, %s10
  %s13 = scalar_select 0, %s12, %s10
  $region1: #{tpu_custom_call.1} parent=0
    #allocation2 [shape = 'u8[4096]{0}', space=vmem, size = 0x1000, scoped, tag = 'input window, operand 0, single buffered']
    #allocation3 [shape = 's32[1]{0}', space=sflag, size = 0x4, scoped, tag = 'scoped memory for tpu_custom_call.1']
    #allocation4 [shape = 's32[1]{0}', space=sflag, size = 0x4, scoped, tag = 'scoped memory for tpu_custom_call.1']
    #allocation5 [shape = 'u8[32768]{0}', space=vmem, size = 0x8000, scoped, tag = 'input window, operand 1, single buffered']
    #allocation6 [shape = 's32[1]{0}', space=sflag, size = 0x4, scoped, tag = 'scoped memory for tpu_custom_call.1']
    #allocation7 [shape = 'u8[262144]{0}', space=vmem, size = 0x40000, scoped, tag = 'input window, operand 3, single buffered']
    #allocation8 [shape = 'u8[65536]{0}', space=vmem, size = 0x10000, scoped, tag = 'input window, operand 5, single buffered']
    #allocation9 [shape = 's32[1]{0}', space=sflag, size = 0x4, scoped, tag = 'scoped memory for tpu_custom_call.1']
    #allocation10 [shape = 'u8[32768]{0}', space=vmem, size = 0x8000, scoped, tag = 'input window, operand 7, single buffered']
    #allocation11 [shape = 'u8[8192]{0}', space=vmem, size = 0x2000, scoped, tag = 'output window, operand 0, single buffered']
    %14 = vsyncpa [#allocation3], 0
    %15 = vsyncpa [#allocation6], 0
    %16 = vsyncpa [#allocation9], 0
    %17 = vsyncpa [#allocation4], 0
    // Predicated region
    $region2: #{tpu_custom_call.1} parent=1 // pred_check
      _
    $region3: #{tpu_custom_call.1} parent=1 // pred_check_branch
      %19 = sbr.rel (0) target = $region5
    $region4: #{tpu_custom_call.1} parent=1 // pred_region
      %s21 = ssub.s32 128, 128
      %22 = vsyncadd [#allocation3], %s21
      %s23 = sshll.u32 [#allocation2], 4
      %s24 = int_to_ptr.vmem [resolvable:$true] %s23
      %29 = dma.hbm_to_vmem [thread:$0]  %s0, 128, %s24, [#allocation3], 64, 64, 4
    $region5: #{tpu_custom_call.1} parent=1 // pred_fallthru
      _
    // Predicated region
    $region6: #{tpu_custom_call.1} parent=1 // pred_check
      _
    $region7: #{tpu_custom_call.1} parent=1 // pred_check_branch
      %31 = sbr.rel (0) target = $region9
    $region8: #{tpu_custom_call.1} parent=1 // pred_region
      %s33 = ssub.s32 1024, 1024
      %34 = vsyncadd [#allocation6], %s33
      %s35 = sshll.u32 [#allocation5], 4
      %s36 = int_to_ptr.vmem [resolvable:$true] %s35
      %41 = dma.hbm_to_vmem [thread:$0]  %s1, 1024, %s36, [#allocation6], 256, 256, 16
    $region9: #{tpu_custom_call.1} parent=1 // pred_fallthru
      _
    // Predicated region
    $region10: #{tpu_custom_call.1} parent=1 // pred_check
      _
    $region11: #{tpu_custom_call.1} parent=1 // pred_check_branch
      %43 = sbr.rel (0) target = $region13
    $region12: #{tpu_custom_call.1} parent=1 // pred_region
      _
    $region13: #{tpu_custom_call.1} parent=1 // pred_fallthru
      _
    // Predicated region
    $region14: #{tpu_custom_call.1} parent=1 // pred_check
      _
    $region15: #{tpu_custom_call.1} parent=1 // pred_check_branch
      %45 = sbr.rel (0) target = $region17
    $region16: #{tpu_custom_call.1} parent=1 // pred_region
      %s47 = ssub.s32 8192, 8192
      %48 = vsyncadd [#allocation6], %s47
      %s49 = sshll.u32 [#allocation7], 4
      %s50 = int_to_ptr.vmem [resolvable:$true] %s49
      %55 = dma.hbm_to_vmem [thread:$0]  %s3, 8192, %s50, [#allocation6], 128, 128, 8
    $region17: #{tpu_custom_call.1} parent=1 // pred_fallthru
      _
    // Predicated region
    $region18: #{tpu_custom_call.1} parent=1 // pred_check
      _
    $region19: #{tpu_custom_call.1} parent=1 // pred_check_branch
      %57 = sbr.rel (0) target = $region21
    $region20: #{tpu_custom_call.1} parent=1 // pred_region
      _
    $region21: #{tpu_custom_call.1} parent=1 // pred_fallthru
      _
    // Predicated region
    $region22: #{tpu_custom_call.1} parent=1 // pred_check
      _
    $region23: #{tpu_custom_call.1} parent=1 // pred_check_branch
      %59 = sbr.rel (0) target = $region25
    $region24: #{tpu_custom_call.1} parent=1 // pred_region
      %s61 = ssub.s32 2048, 2048
      %62 = vsyncadd [#allocation9], %s61
      %s63 = sshll.u32 [#allocation8], 4
      %s64 = int_to_ptr.vmem [resolvable:$true] %s63
      %69 = dma.hbm_to_vmem [thread:$0]  %s5, 2048, %s64, [#allocation9], 64, 64, 4
    $region25: #{tpu_custom_call.1} parent=1 // pred_fallthru
      _
    // Predicated region
    $region26: #{tpu_custom_call.1} parent=1 // pred_check
      _
    $region27: #{tpu_custom_call.1} parent=1 // pred_check_branch
      %71 = sbr.rel (0) target = $region29
    $region28: #{tpu_custom_call.1} parent=1 // pred_region
      _
    $region29: #{tpu_custom_call.1} parent=1 // pred_fallthru
      _
    // Predicated region
    $region30: #{tpu_custom_call.1} parent=1 // pred_check
      _
    $region31: #{tpu_custom_call.1} parent=1 // pred_check_branch
      %73 = sbr.rel (0) target = $region33
    $region32: #{tpu_custom_call.1} parent=1 // pred_region
      %s75 = ssub.s32 1024, 1024
      %76 = vsyncadd [#allocation9], %s75
      %s77 = sshll.u32 [#allocation10], 4
      %s78 = int_to_ptr.vmem [resolvable:$true] %s77
      %83 = dma.hbm_to_vmem [thread:$0]  %s7, 1024, %s78, [#allocation9], 64, 64, 4
    $region33: #{tpu_custom_call.1} parent=1 // pred_fallthru
      _
    // Predicated region
    $region34: #{tpu_custom_call.1} parent=1 // pred_check
      _
    $region35: #{tpu_custom_call.1} parent=1 // pred_check_branch
      %85 = sbr.rel (0) target = $region37
    $region36: #{tpu_custom_call.1} parent=1 // pred_region
      _
    $region37: #{tpu_custom_call.1} parent=1 // pred_fallthru
      _
    // Predicated region
    $region38: #{tpu_custom_call.1} parent=1 // pred_check
      _
    $region39: #{tpu_custom_call.1} parent=1 // pred_check_branch
      %87 = sbr.rel (0) target = $region41
    $region40: #{tpu_custom_call.1} parent=1 // pred_region
      %88 = dma.done [#allocation3], 128
    $region41: #{tpu_custom_call.1} parent=1 // pred_fallthru
      _
    // Predicated region
    $region42: #{tpu_custom_call.1} parent=1 // pred_check
      _
    $region43: #{tpu_custom_call.1} parent=1 // pred_check_branch
      %90 = sbr.rel (0) target = $region45
    $region44: #{tpu_custom_call.1} parent=1 // pred_region
      %91 = dma.done [#allocation6], 1024
    $region45: #{tpu_custom_call.1} parent=1 // pred_fallthru
      _
    // Predicated region
    $region46: #{tpu_custom_call.1} parent=1 // pred_check
      _
    $region47: #{tpu_custom_call.1} parent=1 // pred_check_branch
      %93 = sbr.rel (0) target = $region49
    $region48: #{tpu_custom_call.1} parent=1 // pred_region
      %94 = dma.done [#allocation6], 8192
    $region49: #{tpu_custom_call.1} parent=1 // pred_fallthru
      _
    // Predicated region
    $region50: #{tpu_custom_call.1} parent=1 // pred_check
      _
    $region51: #{tpu_custom_call.1} parent=1 // pred_check_branch
      %96 = sbr.rel (0) target = $region53
    $region52: #{tpu_custom_call.1} parent=1 // pred_region
      %97 = dma.done [#allocation9], 2048
    $region53: #{tpu_custom_call.1} parent=1 // pred_fallthru
      _
    // Predicated region
    $region54: #{tpu_custom_call.1} parent=1 // pred_check
      _
    $region55: #{tpu_custom_call.1} parent=1 // pred_check_branch
      %99 = sbr.rel (0) target = $region57
    $region56: #{tpu_custom_call.1} parent=1 // pred_region
      %100 = dma.done [#allocation9], 1024
    $region57: #{tpu_custom_call.1} parent=1 // pred_fallthru
      _
    %v102 = vld [vmem:[#allocation2] sm:$0xf]
    %v103 = vld [vmem:[#allocation2 + $0x4] sm:$0xf]
    %v104 = vld [vmem:[#allocation5] sm:$0xff]
    %v105 = vld [vmem:[#allocation5 + $0x8] sm:$0xff]
    %v106 = vld [vmem:[#allocation5 + $0x10] sm:$0xff]
    %v107 = vld [vmem:[#allocation5 + $0x18] sm:$0xff]
    %v108 = vld [vmem:[#allocation5 + $0x20] sm:$0xff]
    %v109 = vld [vmem:[#allocation5 + $0x28] sm:$0xff]
    %v110 = vld [vmem:[#allocation5 + $0x30] sm:$0xff]
    %v111 = vld [vmem:[#allocation5 + $0x38] sm:$0xff]
    %v112 = vld [vmem:[%s2] sm:$0xf]
    %v114 = vlaneseq
    %v115 = vshrl.u32 %v114, 7
    %v116 = vsub.s32 0, %v115
    %v117 = vrot.slane %v112, %v116
    %v118 = vlaneseq
    %v119 = vshrl.u32 %v118, 7
    %v120 = vsub.s32 1, %v119
    %v121 = vrot.slane %v112, %v120
    %v122 = vlaneseq
    %v123 = vshrl.u32 %v122, 7
    %v124 = vsub.s32 2, %v123
    %v125 = vrot.slane %v112, %v124
    %v126 = vlaneseq
    %v127 = vshrl.u32 %v126, 7
    %v128 = vsub.s32 3, %v127
    %v129 = vrot.slane %v112, %v128
    %v136 = vunpack.c.l.b16 %v102
    %v137 = vunpack.c.l.b16 %v103
    %v138 = vpack.c.b16 %v137, %v136
    %v147 = vunpack.c.l.b16 %v104
    %v148 = vunpack.c.h.b16 %v104
    %v149 = vunpack.c.l.b16 %v105
    %v150 = vunpack.c.h.b16 %v105
    %v151 = vunpack.c.l.b16 %v106
    %v152 = vunpack.c.h.b16 %v106
    %v153 = vunpack.c.l.b16 %v107
    %v154 = vunpack.c.h.b16 %v107
    %v155 = vunpack.c.l.b16 %v108
    %v156 = vunpack.c.h.b16 %v108
    %v157 = vunpack.c.l.b16 %v109
    %v158 = vunpack.c.h.b16 %v109
    %v159 = vunpack.c.l.b16 %v110
    %v160 = vunpack.c.h.b16 %v110
    %v161 = vunpack.c.l.b16 %v111
    %v162 = vunpack.c.h.b16 %v111
    %v163 = vpack.c.b16 %v151, %v147
    %v164 = vpack.c.b16 %v152, %v148
    %v165 = vpack.c.b16 %v153, %v149
    %v166 = vpack.c.b16 %v154, %v150
    %v167 = vpack.c.b16 %v159, %v155
    %v168 = vpack.c.b16 %v160, %v156
    %v169 = vpack.c.b16 %v161, %v157
    %v170 = vpack.c.b16 %v162, %v158
    %vm179 = vcmask 261120
    %v181 = vsel %vm179, %v138, 0
    %183 = vmatprep.subr.bf16.mxu0 %v164
    %184 = vmatpush1.bf16.msra.mxu0 %v163
    %185 = vmatprep.subr.bf16.mxu0 %v168
    %186 = vmatpush1.bf16.msra.mxu0 %v167
    %187 = vmatprep.subr.bf16.mxu0 0
    %188 = vmatpush1.bf16.msra.mxu0 0
    %189 = vmatprep.subr.bf16.mxu0 0
    %190 = vmatpush1.bf16.msra.mxu0 0
    %191 = vmatprep.subr.bf16.mxu0 0
    %192 = vmatpush1.bf16.msra.mxu0 0
    %193 = vmatprep.subr.bf16.mxu0 0
    %194 = vmatpush1.bf16.msra.mxu0 0
    %195 = vmatprep.subr.bf16.mxu0 0
    %196 = vmatpush1.bf16.msra.mxu0 0
    %197 = vmatprep.subr.bf16.mxu0 0
    %198 = vmatpush1.bf16.msra.mxu0 0
    %199 = vmatprep.subr.bf16.mxu0 0
    %200 = vmatpush1.bf16.msra.mxu0 0
    %201 = vmatprep.subr.bf16.mxu0 0
    %202 = vmatpush1.bf16.msra.mxu0 0
    %203 = vmatprep.subr.bf16.mxu0 0
    %204 = vmatpush1.bf16.msra.mxu0 0
    %205 = vmatprep.subr.bf16.mxu0 0
    %206 = vmatpush1.bf16.msra.mxu0 0
    %207 = vmatprep.subr.bf16.mxu0 0
    %208 = vmatpush1.bf16.msra.mxu0 0
    %209 = vmatprep.subr.bf16.mxu0 0
    %210 = vmatpush1.bf16.msra.mxu0 0
    %211 = vmatprep.subr.bf16.mxu0 0
    %212 = vmatpush1.bf16.msra.mxu0 0
    %213 = vmatprep.subr.bf16.mxu0 0
    %214 = vmatpush1.bf16.msra.mxu0 0
    %215 = vmatprep.mubr.bf16.mxu0 0
    %216 = vmatmul.mubr.bf16.gmra.mrb[0].mxu0 %v181
    %v217 = vpop.f32.mrb[0].mxu0
    %v218 = vadd.f32 %v117, %v217
    %v219 = vpop.f32.mrb[0].mxu0
    %v220 = vadd.f32 %v121, %v219
    %v221 = vpop.f32.mrb[0].mxu0
    %v222 = vadd.f32 %v117, %v221
    %v223 = vpop.f32.mrb[0].mxu0
    %v224 = vadd.f32 %v121, %v223
    %225 = vdwg.mxu0
    %226 = vmatprep.subr.bf16.mxu0 %v166
    %227 = vmatpush1.bf16.msra.mxu0 %v165
    %228 = vmatprep.subr.bf16.mxu0 %v170
    %229 = vmatpush1.bf16.msra.mxu0 %v169
    %230 = vmatprep.subr.bf16.mxu0 0
    %231 = vmatpush1.bf16.msra.mxu0 0
    %232 = vmatprep.subr.bf16.mxu0 0
    %233 = vmatpush1.bf16.msra.mxu0 0
    %234 = vmatprep.subr.bf16.mxu0 0
    %235 = vmatpush1.bf16.msra.mxu0 0
    %236 = vmatprep.subr.bf16.mxu0 0
    %237 = vmatpush1.bf16.msra.mxu0 0
    %238 = vmatprep.subr.bf16.mxu0 0
    %239 = vmatpush1.bf16.msra.mxu0 0
    %240 = vmatprep.subr.bf16.mxu0 0
    %241 = vmatpush1.bf16.msra.mxu0 0
    %242 = vmatprep.subr.bf16.mxu0 0
    %243 = vmatpush1.bf16.msra.mxu0 0
    %244 = vmatprep.subr.bf16.mxu0 0
    %245 = vmatpush1.bf16.msra.mxu0 0
    %246 = vmatprep.subr.bf16.mxu0 0
    %247 = vmatpush1.bf16.msra.mxu0 0
    %248 = vmatprep.subr.bf16.mxu0 0
    %249 = vmatpush1.bf16.msra.mxu0 0
    %250 = vmatprep.subr.bf16.mxu0 0
    %251 = vmatpush1.bf16.msra.mxu0 0
    %252 = vmatprep.subr.bf16.mxu0 0
    %253 = vmatpush1.bf16.msra.mxu0 0
    %254 = vmatprep.subr.bf16.mxu0 0
    %255 = vmatpush1.bf16.msra.mxu0 0
    %256 = vmatprep.subr.bf16.mxu0 0
    %257 = vmatpush1.bf16.msra.mxu0 0
    %258 = vmatprep.mubr.bf16.mxu0 0
    %259 = vmatmul.mubr.bf16.gmra.mrb[0].mxu0 %v181
    %v260 = vpop.f32.mrb[0].mxu0
    %v261 = vadd.f32 %v125, %v260
    %v262 = vpop.f32.mrb[0].mxu0
    %v263 = vadd.f32 %v129, %v262
    %v264 = vpop.f32.mrb[0].mxu0
    %v265 = vadd.f32 %v125, %v264
    %v266 = vpop.f32.mrb[0].mxu0
    %v267 = vadd.f32 %v129, %v266
    %268 = vdwg.mxu0
    %v269 = vmax.f32 %v218, 0.0
    %v270 = vmax.f32 %v220, 0.0
    %v271 = vmax.f32 %v261, 0.0
    %v272 = vmax.f32 %v263, 0.0
    %v273 = vmax.f32 %v222, 0.0
    %v274 = vmax.f32 %v224, 0.0
    %v275 = vmax.f32 %v265, 0.0
    %v276 = vmax.f32 %v267, 0.0
    %v277 = vpack.c.bf16 %v273, %v269
    %v278 = vpack.c.bf16 %v274, %v270
    %v279 = vpack.c.bf16 %v275, %v271
    %v280 = vpack.c.bf16 %v276, %v272
    %v281 = vld [vmem:[#allocation7] sm:$0xff]
    %v282 = vld [vmem:[#allocation7 + $0x8] sm:$0xff]
    %v283 = vld [vmem:[#allocation7 + $0x10] sm:$0xff]
    %v284 = vld [vmem:[#allocation7 + $0x18] sm:$0xff]
    %v285 = vld [vmem:[#allocation7 + $0x20] sm:$0xff]
    %v286 = vld [vmem:[#allocation7 + $0x28] sm:$0xff]
    %v287 = vld [vmem:[#allocation7 + $0x30] sm:$0xff]
    %v288 = vld [vmem:[#allocation7 + $0x38] sm:$0xff]
    %v289 = vld [vmem:[#allocation7 + $0x40] sm:$0xff]
    %v290 = vld [vmem:[#allocation7 + $0x48] sm:$0xff]
    %v291 = vld [vmem:[#allocation7 + $0x50] sm:$0xff]
    %v292 = vld [vmem:[#allocation7 + $0x58] sm:$0xff]
    %v293 = vld [vmem:[#allocation7 + $0x60] sm:$0xff]
    %v294 = vld [vmem:[#allocation7 + $0x68] sm:$0xff]
    %v295 = vld [vmem:[#allocation7 + $0x70] sm:$0xff]
    %v296 = vld [vmem:[#allocation7 + $0x78] sm:$0xff]
    %v297 = vld [vmem:[#allocation7 + $0x80] sm:$0xff]
    %v298 = vld [vmem:[#allocation7 + $0x88] sm:$0xff]
    %v299 = vld [vmem:[#allocation7 + $0x90] sm:$0xff]
    %v300 = vld [vmem:[#allocation7 + $0x98] sm:$0xff]
    %v301 = vld [vmem:[#allocation7 + $0xa0] sm:$0xff]
    %v302 = vld [vmem:[#allocation7 + $0xa8] sm:$0xff]
    %v303 = vld [vmem:[#allocation7 + $0xb0] sm:$0xff]
    %v304 = vld [vmem:[#allocation7 + $0xb8] sm:$0xff]
    %v305 = vld [vmem:[#allocation7 + $0xc0] sm:$0xff]
    %v306 = vld [vmem:[#allocation7 + $0xc8] sm:$0xff]
    %v307 = vld [vmem:[#allocation7 + $0xd0] sm:$0xff]
    %v308 = vld [vmem:[#allocation7 + $0xd8] sm:$0xff]
    %v309 = vld [vmem:[#allocation7 + $0xe0] sm:$0xff]
    %v310 = vld [vmem:[#allocation7 + $0xe8] sm:$0xff]
    %v311 = vld [vmem:[#allocation7 + $0xf0] sm:$0xff]
    %v312 = vld [vmem:[#allocation7 + $0xf8] sm:$0xff]
    %v313 = vld [vmem:[#allocation7 + $0x100] sm:$0xff]
    %v314 = vld [vmem:[#allocation7 + $0x108] sm:$0xff]
    %v315 = vld [vmem:[#allocation7 + $0x110] sm:$0xff]
    %v316 = vld [vmem:[#allocation7 + $0x118] sm:$0xff]
    %v317 = vld [vmem:[#allocation7 + $0x120] sm:$0xff]
    %v318 = vld [vmem:[#allocation7 + $0x128] sm:$0xff]
    %v319 = vld [vmem:[#allocation7 + $0x130] sm:$0xff]
    %v320 = vld [vmem:[#allocation7 + $0x138] sm:$0xff]
    %v321 = vld [vmem:[#allocation7 + $0x140] sm:$0xff]
    %v322 = vld [vmem:[#allocation7 + $0x148] sm:$0xff]
    %v323 = vld [vmem:[#allocation7 + $0x150] sm:$0xff]
    %v324 = vld [vmem:[#allocation7 + $0x158] sm:$0xff]
    %v325 = vld [vmem:[#allocation7 + $0x160] sm:$0xff]
    %v326 = vld [vmem:[#allocation7 + $0x168] sm:$0xff]
    %v327 = vld [vmem:[#allocation7 + $0x170] sm:$0xff]
    %v328 = vld [vmem:[#allocation7 + $0x178] sm:$0xff]
    %v329 = vld [vmem:[#allocation7 + $0x180] sm:$0xff]
    %v330 = vld [vmem:[#allocation7 + $0x188] sm:$0xff]
    %v331 = vld [vmem:[#allocation7 + $0x190] sm:$0xff]
    %v332 = vld [vmem:[#allocation7 + $0x198] sm:$0xff]
    %v333 = vld [vmem:[#allocation7 + $0x1a0] sm:$0xff]
    %v334 = vld [vmem:[#allocation7 + $0x1a8] sm:$0xff]
    %v335 = vld [vmem:[#allocation7 + $0x1b0] sm:$0xff]
    %v336 = vld [vmem:[#allocation7 + $0x1b8] sm:$0xff]
    %v337 = vld [vmem:[#allocation7 + $0x1c0] sm:$0xff]
    %v338 = vld [vmem:[#allocation7 + $0x1c8] sm:$0xff]
    %v339 = vld [vmem:[#allocation7 + $0x1d0] sm:$0xff]
    %v340 = vld [vmem:[#allocation7 + $0x1d8] sm:$0xff]
    %v341 = vld [vmem:[#allocation7 + $0x1e0] sm:$0xff]
    %v342 = vld [vmem:[#allocation7 + $0x1e8] sm:$0xff]
    %v343 = vld [vmem:[#allocation7 + $0x1f0] sm:$0xff]
    %v344 = vld [vmem:[#allocation7 + $0x1f8] sm:$0xff]
    %v345 = vld [vmem:[%s4] sm:$0x3]
    %v347 = vlaneseq
    %v348 = vshrl.u32 %v347, 7
    %v349 = vsub.s32 0, %v348
    %v350 = vrot.slane %v345, %v349
    %v351 = vlaneseq
    %v352 = vshrl.u32 %v351, 7
    %v353 = vsub.s32 1, %v352
    %v354 = vrot.slane %v345, %v353
    %v421 = vunpack.c.l.b16 %v281
    %v422 = vunpack.c.h.b16 %v281
    %v423 = vunpack.c.l.b16 %v282
    %v424 = vunpack.c.h.b16 %v282
    %v425 = vunpack.c.l.b16 %v283
    %v426 = vunpack.c.h.b16 %v283
    %v427 = vunpack.c.l.b16 %v284
    %v428 = vunpack.c.h.b16 %v284
    %v429 = vunpack.c.l.b16 %v285
    %v430 = vunpack.c.h.b16 %v285
    %v431 = vunpack.c.l.b16 %v286
    %v432 = vunpack.c.h.b16 %v286
    %v433 = vunpack.c.l.b16 %v287
    %v434 = vunpack.c.h.b16 %v287
    %v435 = vunpack.c.l.b16 %v288
    %v436 = vunpack.c.h.b16 %v288
    %v437 = vunpack.c.l.b16 %v289
    %v438 = vunpack.c.h.b16 %v289
    %v439 = vunpack.c.l.b16 %v290
    %v440 = vunpack.c.h.b16 %v290
    %v441 = vunpack.c.l.b16 %v291
    %v442 = vunpack.c.h.b16 %v291
    %v443 = vunpack.c.l.b16 %v292
    %v444 = vunpack.c.h.b16 %v292
    %v445 = vunpack.c.l.b16 %v293
    %v446 = vunpack.c.h.b16 %v293
    %v447 = vunpack.c.l.b16 %v294
    %v448 = vunpack.c.h.b16 %v294
    %v449 = vunpack.c.l.b16 %v295
    %v450 = vunpack.c.h.b16 %v295
    %v451 = vunpack.c.l.b16 %v296
    %v452 = vunpack.c.h.b16 %v296
    %v453 = vunpack.c.l.b16 %v297
    %v454 = vunpack.c.h.b16 %v297
    %v455 = vunpack.c.l.b16 %v298
    %v456 = vunpack.c.h.b16 %v298
    %v457 = vunpack.c.l.b16 %v299
    %v458 = vunpack.c.h.b16 %v299
    %v459 = vunpack.c.l.b16 %v300
    %v460 = vunpack.c.h.b16 %v300
    %v461 = vunpack.c.l.b16 %v301
    %v462 = vunpack.c.h.b16 %v301
    %v463 = vunpack.c.l.b16 %v302
    %v464 = vunpack.c.h.b16 %v302
    %v465 = vunpack.c.l.b16 %v303
    %v466 = vunpack.c.h.b16 %v303
    %v467 = vunpack.c.l.b16 %v304
    %v468 = vunpack.c.h.b16 %v304
    %v469 = vunpack.c.l.b16 %v305
    %v470 = vunpack.c.h.b16 %v305
    %v471 = vunpack.c.l.b16 %v306
    %v472 = vunpack.c.h.b16 %v306
    %v473 = vunpack.c.l.b16 %v307
    %v474 = vunpack.c.h.b16 %v307
    %v475 = vunpack.c.l.b16 %v308
    %v476 = vunpack.c.h.b16 %v308
    %v477 = vunpack.c.l.b16 %v309
    %v478 = vunpack.c.h.b16 %v309
    %v479 = vunpack.c.l.b16 %v310
    %v480 = vunpack.c.h.b16 %v310
    %v481 = vunpack.c.l.b16 %v311
    %v482 = vunpack.c.h.b16 %v311
    %v483 = vunpack.c.l.b16 %v312
    %v484 = vunpack.c.h.b16 %v312
    %v485 = vunpack.c.l.b16 %v313
    %v486 = vunpack.c.h.b16 %v313
    %v487 = vunpack.c.l.b16 %v314
    %v488 = vunpack.c.h.b16 %v314
    %v489 = vunpack.c.l.b16 %v315
    %v490 = vunpack.c.h.b16 %v315
    %v491 = vunpack.c.l.b16 %v316
    %v492 = vunpack.c.h.b16 %v316
    %v493 = vunpack.c.l.b16 %v317
    %v494 = vunpack.c.h.b16 %v317
    %v495 = vunpack.c.l.b16 %v318
    %v496 = vunpack.c.h.b16 %v318
    %v497 = vunpack.c.l.b16 %v319
    %v498 = vunpack.c.h.b16 %v319
    %v499 = vunpack.c.l.b16 %v320
    %v500 = vunpack.c.h.b16 %v320
    %v501 = vunpack.c.l.b16 %v321
    %v502 = vunpack.c.h.b16 %v321
    %v503 = vunpack.c.l.b16 %v322
    %v504 = vunpack.c.h.b16 %v322
    %v505 = vunpack.c.l.b16 %v323
    %v506 = vunpack.c.h.b16 %v323
    %v507 = vunpack.c.l.b16 %v324
    %v508 = vunpack.c.h.b16 %v324
    %v509 = vunpack.c.l.b16 %v325
    %v510 = vunpack.c.h.b16 %v325
    %v511 = vunpack.c.l.b16 %v326
    %v512 = vunpack.c.h.b16 %v326
    %v513 = vunpack.c.l.b16 %v327
    %v514 = vunpack.c.h.b16 %v327
    %v515 = vunpack.c.l.b16 %v328
    %v516 = vunpack.c.h.b16 %v328
    %v517 = vunpack.c.l.b16 %v329
    %v518 = vunpack.c.h.b16 %v329
    %v519 = vunpack.c.l.b16 %v330
    %v520 = vunpack.c.h.b16 %v330
    %v521 = vunpack.c.l.b16 %v331
    %v522 = vunpack.c.h.b16 %v331
    %v523 = vunpack.c.l.b16 %v332
    %v524 = vunpack.c.h.b16 %v332
    %v525 = vunpack.c.l.b16 %v333
    %v526 = vunpack.c.h.b16 %v333
    %v527 = vunpack.c.l.b16 %v334
    %v528 = vunpack.c.h.b16 %v334
    %v529 = vunpack.c.l.b16 %v335
    %v530 = vunpack.c.h.b16 %v335
    %v531 = vunpack.c.l.b16 %v336
    %v532 = vunpack.c.h.b16 %v336
    %v533 = vunpack.c.l.b16 %v337
    %v534 = vunpack.c.h.b16 %v337
    %v535 = vunpack.c.l.b16 %v338
    %v536 = vunpack.c.h.b16 %v338
    %v537 = vunpack.c.l.b16 %v339
    %v538 = vunpack.c.h.b16 %v339
    %v539 = vunpack.c.l.b16 %v340
    %v540 = vunpack.c.h.b16 %v340
    %v541 = vunpack.c.l.b16 %v341
    %v542 = vunpack.c.h.b16 %v341
    %v543 = vunpack.c.l.b16 %v342
    %v544 = vunpack.c.h.b16 %v342
    %v545 = vunpack.c.l.b16 %v343
    %v546 = vunpack.c.h.b16 %v343
    %v547 = vunpack.c.l.b16 %v344
    %v548 = vunpack.c.h.b16 %v344
    %v549 = vpack.c.b16 %v423, %v421
    %v550 = vpack.c.b16 %v424, %v422
    %v551 = vpack.c.b16 %v427, %v425
    %v552 = vpack.c.b16 %v428, %v426
    %v553 = vpack.c.b16 %v431, %v429
    %v554 = vpack.c.b16 %v432, %v430
    %v555 = vpack.c.b16 %v435, %v433
    %v556 = vpack.c.b16 %v436, %v434
    %v557 = vpack.c.b16 %v439, %v437
    %v558 = vpack.c.b16 %v440, %v438
    %v559 = vpack.c.b16 %v443, %v441
    %v560 = vpack.c.b16 %v444, %v442
    %v561 = vpack.c.b16 %v447, %v445
    %v562 = vpack.c.b16 %v448, %v446
    %v563 = vpack.c.b16 %v451, %v449
    %v564 = vpack.c.b16 %v452, %v450
    %v565 = vpack.c.b16 %v455, %v453
    %v566 = vpack.c.b16 %v456, %v454
    %v567 = vpack.c.b16 %v459, %v457
    %v568 = vpack.c.b16 %v460, %v458
    %v569 = vpack.c.b16 %v463, %v461
    %v570 = vpack.c.b16 %v464, %v462
    %v571 = vpack.c.b16 %v467, %v465
    %v572 = vpack.c.b16 %v468, %v466
    %v573 = vpack.c.b16 %v471, %v469
    %v574 = vpack.c.b16 %v472, %v470
    %v575 = vpack.c.b16 %v475, %v473
    %v576 = vpack.c.b16 %v476, %v474
    %v577 = vpack.c.b16 %v479, %v477
    %v578 = vpack.c.b16 %v480, %v478
    %v579 = vpack.c.b16 %v483, %v481
    %v580 = vpack.c.b16 %v484, %v482
    %v581 = vpack.c.b16 %v487, %v485
    %v582 = vpack.c.b16 %v488, %v486
    %v583 = vpack.c.b16 %v491, %v489
    %v584 = vpack.c.b16 %v492, %v490
    %v585 = vpack.c.b16 %v495, %v493
    %v586 = vpack.c.b16 %v496, %v494
    %v587 = vpack.c.b16 %v499, %v497
    %v588 = vpack.c.b16 %v500, %v498
    %v589 = vpack.c.b16 %v503, %v501
    %v590 = vpack.c.b16 %v504, %v502
    %v591 = vpack.c.b16 %v507, %v505
    %v592 = vpack.c.b16 %v508, %v506
    %v593 = vpack.c.b16 %v511, %v509
    %v594 = vpack.c.b16 %v512, %v510
    %v595 = vpack.c.b16 %v515, %v513
    %v596 = vpack.c.b16 %v516, %v514
    %v597 = vpack.c.b16 %v519, %v517
    %v598 = vpack.c.b16 %v520, %v518
    %v599 = vpack.c.b16 %v523, %v521
    %v600 = vpack.c.b16 %v524, %v522
    %v601 = vpack.c.b16 %v527, %v525
    %v602 = vpack.c.b16 %v528, %v526
    %v603 = vpack.c.b16 %v531, %v529
    %v604 = vpack.c.b16 %v532, %v530
    %v605 = vpack.c.b16 %v535, %v533
    %v606 = vpack.c.b16 %v536, %v534
    %v607 = vpack.c.b16 %v539, %v537
    %v608 = vpack.c.b16 %v540, %v538
    %v609 = vpack.c.b16 %v543, %v541
    %v610 = vpack.c.b16 %v544, %v542
    %v611 = vpack.c.b16 %v547, %v545
    %v612 = vpack.c.b16 %v548, %v546
    %677 = vmatprep.subr.bf16.mxu0 %v550
    %678 = vmatpush1.bf16.msra.mxu0 %v549
    %679 = vmatprep.subr.bf16.mxu0 %v552
    %680 = vmatpush1.bf16.msra.mxu0 %v551
    %681 = vmatprep.subr.bf16.mxu0 %v554
    %682 = vmatpush1.bf16.msra.mxu0 %v553
    %683 = vmatprep.subr.bf16.mxu0 %v556
    %684 = vmatpush1.bf16.msra.mxu0 %v555
    %685 = vmatprep.subr.bf16.mxu0 %v558
    %686 = vmatpush1.bf16.msra.mxu0 %v557
    %687 = vmatprep.subr.bf16.mxu0 %v560
    %688 = vmatpush1.bf16.msra.mxu0 %v559
    %689 = vmatprep.subr.bf16.mxu0 %v562
    %690 = vmatpush1.bf16.msra.mxu0 %v561
    %691 = vmatprep.subr.bf16.mxu0 %v564
    %692 = vmatpush1.bf16.msra.mxu0 %v563
    %693 = vmatprep.subr.bf16.mxu0 %v566
    %694 = vmatpush1.bf16.msra.mxu0 %v565
    %695 = vmatprep.subr.bf16.mxu0 %v568
    %696 = vmatpush1.bf16.msra.mxu0 %v567
    %697 = vmatprep.subr.bf16.mxu0 %v570
    %698 = vmatpush1.bf16.msra.mxu0 %v569
    %699 = vmatprep.subr.bf16.mxu0 %v572
    %700 = vmatpush1.bf16.msra.mxu0 %v571
    %701 = vmatprep.subr.bf16.mxu0 %v574
    %702 = vmatpush1.bf16.msra.mxu0 %v573
    %703 = vmatprep.subr.bf16.mxu0 %v576
    %704 = vmatpush1.bf16.msra.mxu0 %v575
    %705 = vmatprep.subr.bf16.mxu0 %v578
    %706 = vmatpush1.bf16.msra.mxu0 %v577
    %707 = vmatprep.subr.bf16.mxu0 %v580
    %708 = vmatpush1.bf16.msra.mxu0 %v579
    %709 = vmatprep.mubr.bf16.mxu0 %v278
    %710 = vmatmul.mubr.bf16.gmra.mrb[0].mxu0 %v277
    %v711 = vpop.f32.mrb[0].mxu0
    %v712 = vadd.f32 %v350, %v711
    %v713 = vpop.f32.mrb[0].mxu0
    %v714 = vadd.f32 %v354, %v713
    %v715 = vpop.f32.mrb[0].mxu0
    %v716 = vadd.f32 %v350, %v715
    %v717 = vpop.f32.mrb[0].mxu0
    %v718 = vadd.f32 %v354, %v717
    %719 = vdwg.mxu0
    %720 = vmatprep.subr.bf16.mxu0 %v582
    %721 = vmatpush1.bf16.msra.mxu0 %v581
    %722 = vmatprep.subr.bf16.mxu0 %v584
    %723 = vmatpush1.bf16.msra.mxu0 %v583
    %724 = vmatprep.subr.bf16.mxu0 %v586
    %725 = vmatpush1.bf16.msra.mxu0 %v585
    %726 = vmatprep.subr.bf16.mxu0 %v588
    %727 = vmatpush1.bf16.msra.mxu0 %v587
    %728 = vmatprep.subr.bf16.mxu0 %v590
    %729 = vmatpush1.bf16.msra.mxu0 %v589
    %730 = vmatprep.subr.bf16.mxu0 %v592
    %731 = vmatpush1.bf16.msra.mxu0 %v591
    %732 = vmatprep.subr.bf16.mxu0 %v594
    %733 = vmatpush1.bf16.msra.mxu0 %v593
    %734 = vmatprep.subr.bf16.mxu0 %v596
    %735 = vmatpush1.bf16.msra.mxu0 %v595
    %736 = vmatprep.subr.bf16.mxu0 %v598
    %737 = vmatpush1.bf16.msra.mxu0 %v597
    %738 = vmatprep.subr.bf16.mxu0 %v600
    %739 = vmatpush1.bf16.msra.mxu0 %v599
    %740 = vmatprep.subr.bf16.mxu0 %v602
    %741 = vmatpush1.bf16.msra.mxu0 %v601
    %742 = vmatprep.subr.bf16.mxu0 %v604
    %743 = vmatpush1.bf16.msra.mxu0 %v603
    %744 = vmatprep.subr.bf16.mxu0 %v606
    %745 = vmatpush1.bf16.msra.mxu0 %v605
    %746 = vmatprep.subr.bf16.mxu0 %v608
    %747 = vmatpush1.bf16.msra.mxu0 %v607
    %748 = vmatprep.subr.bf16.mxu0 %v610
    %749 = vmatpush1.bf16.msra.mxu0 %v609
    %750 = vmatprep.subr.bf16.mxu0 %v612
    %751 = vmatpush1.bf16.msra.mxu0 %v611
    %752 = vmatprep.mubr.bf16.mxu0 %v280
    %753 = vmatmul.mubr.bf16.gmra.mrb[0].mxu0 %v279
    %v754 = vpop.f32.mrb[0].mxu0
    %v755 = vadd.f32 %v712, %v754
    %v756 = vpop.f32.mrb[0].mxu0
    %v757 = vadd.f32 %v714, %v756
    %v758 = vpop.f32.mrb[0].mxu0
    %v759 = vadd.f32 %v716, %v758
    %v760 = vpop.f32.mrb[0].mxu0
    %v761 = vadd.f32 %v718, %v760
    %762 = vdwg.mxu0
    %v763 = vmax.f32 %v755, 0.0
    %v764 = vmax.f32 %v757, 0.0
    %v765 = vmax.f32 %v759, 0.0
    %v766 = vmax.f32 %v761, 0.0
    %v767 = vpack.c.bf16 %v765, %v763
    %v768 = vpack.c.bf16 %v766, %v764
    %v769 = vld [vmem:[#allocation8] sm:$0xf]
    %v770 = vld [vmem:[#allocation8 + $0x4] sm:$0xf]
    %v771 = vld [vmem:[#allocation8 + $0x8] sm:$0xf]
    %v772 = vld [vmem:[#allocation8 + $0xc] sm:$0xf]
    %v773 = vld [vmem:[#allocation8 + $0x10] sm:$0xf]
    %v774 = vld [vmem:[#allocation8 + $0x14] sm:$0xf]
    %v775 = vld [vmem:[#allocation8 + $0x18] sm:$0xf]
    %v776 = vld [vmem:[#allocation8 + $0x1c] sm:$0xf]
    %v777 = vld [vmem:[#allocation8 + $0x20] sm:$0xf]
    %v778 = vld [vmem:[#allocation8 + $0x24] sm:$0xf]
    %v779 = vld [vmem:[#allocation8 + $0x28] sm:$0xf]
    %v780 = vld [vmem:[#allocation8 + $0x2c] sm:$0xf]
    %v781 = vld [vmem:[#allocation8 + $0x30] sm:$0xf]
    %v782 = vld [vmem:[#allocation8 + $0x34] sm:$0xf]
    %v783 = vld [vmem:[#allocation8 + $0x38] sm:$0xf]
    %v784 = vld [vmem:[#allocation8 + $0x3c] sm:$0xf]
    %v785 = vld [vmem:[#allocation8 + $0x40] sm:$0xf]
    %v786 = vld [vmem:[#allocation8 + $0x44] sm:$0xf]
    %v787 = vld [vmem:[#allocation8 + $0x48] sm:$0xf]
    %v788 = vld [vmem:[#allocation8 + $0x4c] sm:$0xf]
    %v789 = vld [vmem:[#allocation8 + $0x50] sm:$0xf]
    %v790 = vld [vmem:[#allocation8 + $0x54] sm:$0xf]
    %v791 = vld [vmem:[#allocation8 + $0x58] sm:$0xf]
    %v792 = vld [vmem:[#allocation8 + $0x5c] sm:$0xf]
    %v793 = vld [vmem:[#allocation8 + $0x60] sm:$0xf]
    %v794 = vld [vmem:[#allocation8 + $0x64] sm:$0xf]
    %v795 = vld [vmem:[#allocation8 + $0x68] sm:$0xf]
    %v796 = vld [vmem:[#allocation8 + $0x6c] sm:$0xf]
    %v797 = vld [vmem:[#allocation8 + $0x70] sm:$0xf]
    %v798 = vld [vmem:[#allocation8 + $0x74] sm:$0xf]
    %v799 = vld [vmem:[#allocation8 + $0x78] sm:$0xf]
    %v800 = vld [vmem:[#allocation8 + $0x7c] sm:$0xf]
    %v801 = vld [vmem:[%s6] sm:$0x1]
    %v803 = vlaneseq
    %v804 = vshrl.u32 %v803, 7
    %v805 = vsub.s32 0, %v804
    %v806 = vrot.slane %v801, %v805
    %v840 = vunpack.c.l.b16 %v769
    %v841 = vunpack.c.l.b16 %v770
    %v842 = vunpack.c.l.b16 %v771
    %v843 = vunpack.c.l.b16 %v772
    %v844 = vunpack.c.l.b16 %v773
    %v845 = vunpack.c.l.b16 %v774
    %v846 = vunpack.c.l.b16 %v775
    %v847 = vunpack.c.l.b16 %v776
    %v848 = vunpack.c.l.b16 %v777
    %v849 = vunpack.c.l.b16 %v778
    %v850 = vunpack.c.l.b16 %v779
    %v851 = vunpack.c.l.b16 %v780
    %v852 = vunpack.c.l.b16 %v781
    %v853 = vunpack.c.l.b16 %v782
    %v854 = vunpack.c.l.b16 %v783
    %v855 = vunpack.c.l.b16 %v784
    %v856 = vunpack.c.l.b16 %v785
    %v857 = vunpack.c.l.b16 %v786
    %v858 = vunpack.c.l.b16 %v787
    %v859 = vunpack.c.l.b16 %v788
    %v860 = vunpack.c.l.b16 %v789
    %v861 = vunpack.c.l.b16 %v790
    %v862 = vunpack.c.l.b16 %v791
    %v863 = vunpack.c.l.b16 %v792
    %v864 = vunpack.c.l.b16 %v793
    %v865 = vunpack.c.l.b16 %v794
    %v866 = vunpack.c.l.b16 %v795
    %v867 = vunpack.c.l.b16 %v796
    %v868 = vunpack.c.l.b16 %v797
    %v869 = vunpack.c.l.b16 %v798
    %v870 = vunpack.c.l.b16 %v799
    %v871 = vunpack.c.l.b16 %v800
    %v872 = vpack.c.b16 %v841, %v840
    %v873 = vpack.c.b16 %v843, %v842
    %v874 = vpack.c.b16 %v845, %v844
    %v875 = vpack.c.b16 %v847, %v846
    %v876 = vpack.c.b16 %v849, %v848
    %v877 = vpack.c.b16 %v851, %v850
    %v878 = vpack.c.b16 %v853, %v852
    %v879 = vpack.c.b16 %v855, %v854
    %v880 = vpack.c.b16 %v857, %v856
    %v881 = vpack.c.b16 %v859, %v858
    %v882 = vpack.c.b16 %v861, %v860
    %v883 = vpack.c.b16 %v863, %v862
    %v884 = vpack.c.b16 %v865, %v864
    %v885 = vpack.c.b16 %v867, %v866
    %v886 = vpack.c.b16 %v869, %v868
    %v887 = vpack.c.b16 %v871, %v870
    %904 = vmatprep.subr.bf16.mxu0 0
    %905 = vmatpush1.bf16.msra.mxu0 %v872
    %906 = vmatprep.subr.bf16.mxu0 0
    %907 = vmatpush1.bf16.msra.mxu0 %v873
    %908 = vmatprep.subr.bf16.mxu0 0
    %909 = vmatpush1.bf16.msra.mxu0 %v874
    %910 = vmatprep.subr.bf16.mxu0 0
    %911 = vmatpush1.bf16.msra.mxu0 %v875
    %912 = vmatprep.subr.bf16.mxu0 0
    %913 = vmatpush1.bf16.msra.mxu0 %v876
    %914 = vmatprep.subr.bf16.mxu0 0
    %915 = vmatpush1.bf16.msra.mxu0 %v877
    %916 = vmatprep.subr.bf16.mxu0 0
    %917 = vmatpush1.bf16.msra.mxu0 %v878
    %918 = vmatprep.subr.bf16.mxu0 0
    %919 = vmatpush1.bf16.msra.mxu0 %v879
    %920 = vmatprep.subr.bf16.mxu0 0
    %921 = vmatpush1.bf16.msra.mxu0 %v880
    %922 = vmatprep.subr.bf16.mxu0 0
    %923 = vmatpush1.bf16.msra.mxu0 %v881
    %924 = vmatprep.subr.bf16.mxu0 0
    %925 = vmatpush1.bf16.msra.mxu0 %v882
    %926 = vmatprep.subr.bf16.mxu0 0
    %927 = vmatpush1.bf16.msra.mxu0 %v883
    %928 = vmatprep.subr.bf16.mxu0 0
    %929 = vmatpush1.bf16.msra.mxu0 %v884
    %930 = vmatprep.subr.bf16.mxu0 0
    %931 = vmatpush1.bf16.msra.mxu0 %v885
    %932 = vmatprep.subr.bf16.mxu0 0
    %933 = vmatpush1.bf16.msra.mxu0 %v886
    %934 = vmatprep.subr.bf16.mxu0 0
    %935 = vmatpush1.bf16.msra.mxu0 %v887
    %936 = vmatprep.mubr.bf16.mxu0 %v768
    %937 = vmatmul.mubr.bf16.gmra.mrb[0].mxu0 %v767
    %v938 = vpop.f32.mrb[0].mxu0
    %v939 = vadd.f32 %v806, %v938
    %v940 = vpop.f32.mrb[0].mxu0
    %v941 = vpop.f32.mrb[0].mxu0
    %v942 = vadd.f32 %v806, %v941
    %v943 = vpop.f32.mrb[0].mxu0
    %944 = vdwg.mxu0
    %v945 = vmax.f32 %v939, 0.0
    %v946 = vmax.f32 %v942, 0.0
    %v947 = vpack.c.bf16 %v946, %v945
    %v948 = vld [vmem:[#allocation10] sm:$0xf]
    %v949 = vld [vmem:[#allocation10 + $0x4] sm:$0xf]
    %v950 = vld [vmem:[#allocation10 + $0x8] sm:$0xf]
    %v951 = vld [vmem:[#allocation10 + $0xc] sm:$0xf]
    %v952 = vld [vmem:[#allocation10 + $0x10] sm:$0xf]
    %v953 = vld [vmem:[#allocation10 + $0x14] sm:$0xf]
    %v954 = vld [vmem:[#allocation10 + $0x18] sm:$0xf]
    %v955 = vld [vmem:[#allocation10 + $0x1c] sm:$0xf]
    %v956 = vld [vmem:[#allocation10 + $0x20] sm:$0xf]
    %v957 = vld [vmem:[#allocation10 + $0x24] sm:$0xf]
    %v958 = vld [vmem:[#allocation10 + $0x28] sm:$0xf]
    %v959 = vld [vmem:[#allocation10 + $0x2c] sm:$0xf]
    %v960 = vld [vmem:[#allocation10 + $0x30] sm:$0xf]
    %v961 = vld [vmem:[#allocation10 + $0x34] sm:$0xf]
    %v962 = vld [vmem:[#allocation10 + $0x38] sm:$0xf]
    %v963 = vld [vmem:[#allocation10 + $0x3c] sm:$0xf]
    %v964 = vld [vmem:[%s8] sm:$0x1]
    %v966 = vlaneseq
    %v967 = vshrl.u32 %v966, 7
    %v968 = vsub.s32 0, %v967
    %v969 = vrot.slane %v964, %v968
    %v987 = vunpack.c.l.b16 %v948
    %v988 = vunpack.c.l.b16 %v949
    %v989 = vunpack.c.l.b16 %v950
    %v990 = vunpack.c.l.b16 %v951
    %v991 = vunpack.c.l.b16 %v952
    %v992 = vunpack.c.l.b16 %v953
    %v993 = vunpack.c.l.b16 %v954
    %v994 = vunpack.c.l.b16 %v955
    %v995 = vunpack.c.l.b16 %v956
    %v996 = vunpack.c.l.b16 %v957
    %v997 = vunpack.c.l.b16 %v958
    %v998 = vunpack.c.l.b16 %v959
    %v999 = vunpack.c.l.b16 %v960
    %v1000 = vunpack.c.l.b16 %v961
    %v1001 = vunpack.c.l.b16 %v962
    %v1002 = vunpack.c.l.b16 %v963
    %v1003 = vpack.c.b16 %v988, %v987
    %v1004 = vpack.c.b16 %v990, %v989
    %v1005 = vpack.c.b16 %v992, %v991
    %v1006 = vpack.c.b16 %v994, %v993
    %v1007 = vpack.c.b16 %v996, %v995
    %v1008 = vpack.c.b16 %v998, %v997
    %v1009 = vpack.c.b16 %v1000, %v999
    %v1010 = vpack.c.b16 %v1002, %v1001
    %1019 = vmatprep.subr.bf16.mxu0 0
    %1020 = vmatpush1.bf16.msra.mxu0 %v1003
    %1021 = vmatprep.subr.bf16.mxu0 0
    %1022 = vmatpush1.bf16.msra.mxu0 %v1004
    %1023 = vmatprep.subr.bf16.mxu0 0
    %1024 = vmatpush1.bf16.msra.mxu0 %v1005
    %1025 = vmatprep.subr.bf16.mxu0 0
    %1026 = vmatpush1.bf16.msra.mxu0 %v1006
    %1027 = vmatprep.subr.bf16.mxu0 0
    %1028 = vmatpush1.bf16.msra.mxu0 %v1007
    %1029 = vmatprep.subr.bf16.mxu0 0
    %1030 = vmatpush1.bf16.msra.mxu0 %v1008
    %1031 = vmatprep.subr.bf16.mxu0 0
    %1032 = vmatpush1.bf16.msra.mxu0 %v1009
    %1033 = vmatprep.subr.bf16.mxu0 0
    %1034 = vmatpush1.bf16.msra.mxu0 %v1010
    %1035 = vmatprep.subr.bf16.mxu0 0
    %1036 = vmatpush1.bf16.msra.mxu0 0
    %1037 = vmatprep.subr.bf16.mxu0 0
    %1038 = vmatpush1.bf16.msra.mxu0 0
    %1039 = vmatprep.subr.bf16.mxu0 0
    %1040 = vmatpush1.bf16.msra.mxu0 0
    %1041 = vmatprep.subr.bf16.mxu0 0
    %1042 = vmatpush1.bf16.msra.mxu0 0
    %1043 = vmatprep.subr.bf16.mxu0 0
    %1044 = vmatpush1.bf16.msra.mxu0 0
    %1045 = vmatprep.subr.bf16.mxu0 0
    %1046 = vmatpush1.bf16.msra.mxu0 0
    %1047 = vmatprep.subr.bf16.mxu0 0
    %1048 = vmatpush1.bf16.msra.mxu0 0
    %1049 = vmatprep.subr.bf16.mxu0 0
    %1050 = vmatpush1.bf16.msra.mxu0 0
    %1051 = vmatprep.mubr.bf16.mxu0 0
    %1052 = vmatmul.mubr.bf16.gmra.mrb[0].mxu0 %v947
    %v1053 = vpop.f32.mrb[0].mxu0
    %v1054 = vadd.f32 %v969, %v1053
    %v1055 = vpop.f32.mrb[0].mxu0
    %v1056 = vpop.f32.mrb[0].mxu0
    %v1057 = vadd.f32 %v969, %v1056
    %v1058 = vpop.f32.mrb[0].mxu0
    %1059 = vdwg.mxu0
    %1060 = vst [vmem:[#allocation11] sm:$0xff] %v1054
    %1061 = vst [vmem:[#allocation11 + $0x8] sm:$0xff] %v1057
    // Predicated region
    $region58: #{tpu_custom_call.1} parent=1 // pred_check
      _
    $region59: #{tpu_custom_call.1} parent=1 // pred_check_branch
      %1063 = sbr.rel (0) target = $region61
    $region60: #{tpu_custom_call.1} parent=1 // pred_region
      %s1065 = ssub.s32 256, 256
      %1066 = vsyncadd [#allocation4], %s1065
      %s1067 = sshll.u32 [#allocation11], 4
      %s1068 = int_to_ptr.vmem [resolvable:$true] %s1067
      %1073 = dma.vmem_to_hbm [thread:$0]  %s1068, 256, %s9, [#allocation4], 128, 128, 8
    $region61: #{tpu_custom_call.1} parent=1 // pred_fallthru
      _
    // Predicated region
    $region62: #{tpu_custom_call.1} parent=1 // pred_check
      _
    $region63: #{tpu_custom_call.1} parent=1 // pred_check_branch
      %1075 = sbr.rel (0) target = $region65
    $region64: #{tpu_custom_call.1} parent=1 // pred_region
      %1076 = dma.done [#allocation4], 256
    $region65: #{tpu_custom_call.1} parent=1 // pred_fallthru
      _
    %1077 = vsyncpa [#allocation3], 1
    %1078 = vsyncpa [#allocation6], 1
    %1079 = vsyncpa [#allocation9], 1
    %1080 = vsyncpa [#allocation4], 1

// kernel: tpu_custom_call.1
$region0: #{tpu_custom_call.1}
  #allocation0 [shape = 'u32[]', space=smem, size = 0x4, offset = 0x4, fixed_abs, tag = 'smem constant byte address 0x4 - core index']
  #allocation1 [shape = 'u32[144,128]{1,0:T(1,128)}', space=vmem, size = 0x12000, scoped, tag = 'internal scratch']
  %s0 = inlined_call_operand.hbm [shape: bf16[16,32], index: 0, kind: input, shape index: {}]
  %s1 = inlined_call_operand.hbm [shape: bf16[32,512], index: 1, kind: input, shape index: {}]
  %s2 = inlined_call_operand.vmem [shape: f32[1,512], index: 2, kind: input, shape index: {}]
  %s3 = inlined_call_operand.hbm [shape: bf16[512,256], index: 3, kind: input, shape index: {}]
  %s4 = inlined_call_operand.vmem [shape: f32[1,256], index: 4, kind: input, shape index: {}]
  %s5 = inlined_call_operand.hbm [shape: bf16[256,128], index: 5, kind: input, shape index: {}]
  %s6 = inlined_call_operand.vmem [shape: f32[1,128], index: 6, kind: input, shape index: {}]
  %s7 = inlined_call_operand.hbm [shape: bf16[128,128], index: 7, kind: input, shape index: {}]
  %s8 = inlined_call_operand.vmem [shape: f32[1,128], index: 8, kind: input, shape index: {}]
  %s9 = inlined_call_operand.hbm [shape: f32[16,128], index: 9, kind: output, shape index: {}]
  %s10 = sld [smem:[#allocation0]]
  $region66: #{tpu_custom_call.1} parent=0
    _
  %s12 = ssub.s32 1, %s10
  %s13 = scalar_select 0, %s12, %s10
  $region1: #{tpu_custom_call.1} parent=0
    #allocation2 [shape = 'u8[4096]{0}', space=vmem, size = 0x1000, scoped, tag = 'input window, operand 0, single buffered']
    #allocation3 [shape = 's32[1]{0}', space=sflag, size = 0x4, scoped, tag = 'scoped memory for tpu_custom_call.1']
    #allocation4 [shape = 's32[1]{0}', space=sflag, size = 0x4, scoped, tag = 'scoped memory for tpu_custom_call.1']
    #allocation5 [shape = 'u8[32768]{0}', space=vmem, size = 0x8000, scoped, tag = 'input window, operand 1, single buffered']
    #allocation6 [shape = 's32[1]{0}', space=sflag, size = 0x4, scoped, tag = 'scoped memory for tpu_custom_call.1']
    #allocation7 [shape = 'u8[262144]{0}', space=vmem, size = 0x40000, scoped, tag = 'input window, operand 3, single buffered']
    #allocation8 [shape = 'u8[65536]{0}', space=vmem, size = 0x10000, scoped, tag = 'input window, operand 5, single buffered']
    #allocation9 [shape = 's32[1]{0}', space=sflag, size = 0x4, scoped, tag = 'scoped memory for tpu_custom_call.1']
    #allocation10 [shape = 'u8[32768]{0}', space=vmem, size = 0x8000, scoped, tag = 'input window, operand 7, single buffered']
    #allocation11 [shape = 'u8[8192]{0}', space=vmem, size = 0x2000, scoped, tag = 'output window, operand 0, single buffered']
    %14 = vsyncpa [#allocation3], 0
    %15 = vsyncpa [#allocation6], 0
    %16 = vsyncpa [#allocation9], 0
    %17 = vsyncpa [#allocation4], 0
    // Predicated region
    $region2: #{tpu_custom_call.1} parent=1 // pred_check
      _
    $region3: #{tpu_custom_call.1} parent=1 // pred_check_branch
      %19 = sbr.rel (0) target = $region5
    $region4: #{tpu_custom_call.1} parent=1 // pred_region
      %s21 = ssub.s32 128, 128
      %22 = vsyncadd [#allocation3], %s21
      %s23 = sshll.u32 [#allocation2], 4
      %s24 = int_to_ptr.vmem [resolvable:$true] %s23
      %29 = dma.hbm_to_vmem [thread:$0]  %s0, 128, %s24, [#allocation3], 64, 64, 4
    $region5: #{tpu_custom_call.1} parent=1 // pred_fallthru
      _
    // Predicated region
    $region6: #{tpu_custom_call.1} parent=1 // pred_check
      _
    $region7: #{tpu_custom_call.1} parent=1 // pred_check_branch
      %31 = sbr.rel (0) target = $region9
    $region8: #{tpu_custom_call.1} parent=1 // pred_region
      %s33 = ssub.s32 1024, 1024
      %34 = vsyncadd [#allocation6], %s33
      %s35 = sshll.u32 [#allocation5], 4
      %s36 = int_to_ptr.vmem [resolvable:$true] %s35
      %41 = dma.hbm_to_vmem [thread:$0]  %s1, 1024, %s36, [#allocation6], 256, 256, 16
    $region9: #{tpu_custom_call.1} parent=1 // pred_fallthru
      _
    // Predicated region
    $region10: #{tpu_custom_call.1} parent=1 // pred_check
      _
    $region11: #{tpu_custom_call.1} parent=1 // pred_check_branch
      %43 = sbr.rel (0) target = $region13
    $region12: #{tpu_custom_call.1} parent=1 // pred_region
      _
    $region13: #{tpu_custom_call.1} parent=1 // pred_fallthru
      _
    // Predicated region
    $region14: #{tpu_custom_call.1} parent=1 // pred_check
      _
    $region15: #{tpu_custom_call.1} parent=1 // pred_check_branch
      %45 = sbr.rel (0) target = $region17
    $region16: #{tpu_custom_call.1} parent=1 // pred_region
      %s47 = ssub.s32 8192, 8192
      %48 = vsyncadd [#allocation6], %s47
      %s49 = sshll.u32 [#allocation7], 4
      %s50 = int_to_ptr.vmem [resolvable:$true] %s49
      %55 = dma.hbm_to_vmem [thread:$0]  %s3, 8192, %s50, [#allocation6], 128, 128, 8
    $region17: #{tpu_custom_call.1} parent=1 // pred_fallthru
      _
    // Predicated region
    $region18: #{tpu_custom_call.1} parent=1 // pred_check
      _
    $region19: #{tpu_custom_call.1} parent=1 // pred_check_branch
      %57 = sbr.rel (0) target = $region21
    $region20: #{tpu_custom_call.1} parent=1 // pred_region
      _
    $region21: #{tpu_custom_call.1} parent=1 // pred_fallthru
      _
    // Predicated region
    $region22: #{tpu_custom_call.1} parent=1 // pred_check
      _
    $region23: #{tpu_custom_call.1} parent=1 // pred_check_branch
      %59 = sbr.rel (0) target = $region25
    $region24: #{tpu_custom_call.1} parent=1 // pred_region
      %s61 = ssub.s32 2048, 2048
      %62 = vsyncadd [#allocation9], %s61
      %s63 = sshll.u32 [#allocation8], 4
      %s64 = int_to_ptr.vmem [resolvable:$true] %s63
      %69 = dma.hbm_to_vmem [thread:$0]  %s5, 2048, %s64, [#allocation9], 64, 64, 4
    $region25: #{tpu_custom_call.1} parent=1 // pred_fallthru
      _
    // Predicated region
    $region26: #{tpu_custom_call.1} parent=1 // pred_check
      _
    $region27: #{tpu_custom_call.1} parent=1 // pred_check_branch
      %71 = sbr.rel (0) target = $region29
    $region28: #{tpu_custom_call.1} parent=1 // pred_region
      _
    $region29: #{tpu_custom_call.1} parent=1 // pred_fallthru
      _
    // Predicated region
    $region30: #{tpu_custom_call.1} parent=1 // pred_check
      _
    $region31: #{tpu_custom_call.1} parent=1 // pred_check_branch
      %73 = sbr.rel (0) target = $region33
    $region32: #{tpu_custom_call.1} parent=1 // pred_region
      %s75 = ssub.s32 1024, 1024
      %76 = vsyncadd [#allocation9], %s75
      %s77 = sshll.u32 [#allocation10], 4
      %s78 = int_to_ptr.vmem [resolvable:$true] %s77
      %83 = dma.hbm_to_vmem [thread:$0]  %s7, 1024, %s78, [#allocation9], 64, 64, 4
    $region33: #{tpu_custom_call.1} parent=1 // pred_fallthru
      _
    // Predicated region
    $region34: #{tpu_custom_call.1} parent=1 // pred_check
      _
    $region35: #{tpu_custom_call.1} parent=1 // pred_check_branch
      %85 = sbr.rel (0) target = $region37
    $region36: #{tpu_custom_call.1} parent=1 // pred_region
      _
    $region37: #{tpu_custom_call.1} parent=1 // pred_fallthru
      _
    // Predicated region
    $region38: #{tpu_custom_call.1} parent=1 // pred_check
      _
    $region39: #{tpu_custom_call.1} parent=1 // pred_check_branch
      %87 = sbr.rel (0) target = $region41
    $region40: #{tpu_custom_call.1} parent=1 // pred_region
      %88 = dma.done [#allocation3], 128
    $region41: #{tpu_custom_call.1} parent=1 // pred_fallthru
      _
    // Predicated region
    $region42: #{tpu_custom_call.1} parent=1 // pred_check
      _
    $region43: #{tpu_custom_call.1} parent=1 // pred_check_branch
      %90 = sbr.rel (0) target = $region45
    $region44: #{tpu_custom_call.1} parent=1 // pred_region
      %91 = dma.done [#allocation6], 1024
    $region45: #{tpu_custom_call.1} parent=1 // pred_fallthru
      _
    // Predicated region
    $region46: #{tpu_custom_call.1} parent=1 // pred_check
      _
    $region47: #{tpu_custom_call.1} parent=1 // pred_check_branch
      %93 = sbr.rel (0) target = $region49
    $region48: #{tpu_custom_call.1} parent=1 // pred_region
      %94 = dma.done [#allocation6], 8192
    $region49: #{tpu_custom_call.1} parent=1 // pred_fallthru
      _
    // Predicated region
    $region50: #{tpu_custom_call.1} parent=1 // pred_check
      _
    $region51: #{tpu_custom_call.1} parent=1 // pred_check_branch
      %96 = sbr.rel (0) target = $region53
    $region52: #{tpu_custom_call.1} parent=1 // pred_region
      %97 = dma.done [#allocation9], 2048
    $region53: #{tpu_custom_call.1} parent=1 // pred_fallthru
      _
    // Predicated region
    $region54: #{tpu_custom_call.1} parent=1 // pred_check
      _
    $region55: #{tpu_custom_call.1} parent=1 // pred_check_branch
      %99 = sbr.rel (0) target = $region57
    $region56: #{tpu_custom_call.1} parent=1 // pred_region
      %100 = dma.done [#allocation9], 1024
    $region57: #{tpu_custom_call.1} parent=1 // pred_fallthru
      _
    %v102 = vld [vmem:[#allocation2] sm:$0xf]
    %v103 = vld [vmem:[#allocation2 + $0x4] sm:$0xf]
    %v104 = vld [vmem:[#allocation5] sm:$0xff]
    %v105 = vld [vmem:[#allocation5 + $0x8] sm:$0xff]
    %v106 = vld [vmem:[#allocation5 + $0x10] sm:$0xff]
    %v107 = vld [vmem:[#allocation5 + $0x18] sm:$0xff]
    %v108 = vld [vmem:[#allocation5 + $0x20] sm:$0xff]
    %v109 = vld [vmem:[#allocation5 + $0x28] sm:$0xff]
    %v110 = vld [vmem:[#allocation5 + $0x30] sm:$0xff]
    %v111 = vld [vmem:[#allocation5 + $0x38] sm:$0xff]
    %v112 = vld [vmem:[%s2] sm:$0xf]
    %v114 = vlaneseq
    %v115 = vshrl.u32 %v114, 7
    %v116 = vsub.s32 0, %v115
    %v117 = vrot.slane %v112, %v116
    %v118 = vlaneseq
    %v119 = vshrl.u32 %v118, 7
    %v120 = vsub.s32 1, %v119
    %v121 = vrot.slane %v112, %v120
    %v122 = vlaneseq
    %v123 = vshrl.u32 %v122, 7
    %v124 = vsub.s32 2, %v123
    %v125 = vrot.slane %v112, %v124
    %v126 = vlaneseq
    %v127 = vshrl.u32 %v126, 7
    %v128 = vsub.s32 3, %v127
    %v129 = vrot.slane %v112, %v128
    %v136 = vunpack.c.l.b16 %v102
    %v137 = vunpack.c.l.b16 %v103
    %v138 = vpack.c.b16 %v137, %v136
    %v147 = vunpack.c.l.b16 %v104
    %v148 = vunpack.c.h.b16 %v104
    %v149 = vunpack.c.l.b16 %v105
    %v150 = vunpack.c.h.b16 %v105
    %v151 = vunpack.c.l.b16 %v106
    %v152 = vunpack.c.h.b16 %v106
    %v153 = vunpack.c.l.b16 %v107
    %v154 = vunpack.c.h.b16 %v107
    %v155 = vunpack.c.l.b16 %v108
    %v156 = vunpack.c.h.b16 %v108
    %v157 = vunpack.c.l.b16 %v109
    %v158 = vunpack.c.h.b16 %v109
    %v159 = vunpack.c.l.b16 %v110
    %v160 = vunpack.c.h.b16 %v110
    %v161 = vunpack.c.l.b16 %v111
    %v162 = vunpack.c.h.b16 %v111
    %v163 = vpack.c.b16 %v151, %v147
    %v164 = vpack.c.b16 %v152, %v148
    %v165 = vpack.c.b16 %v153, %v149
    %v166 = vpack.c.b16 %v154, %v150
    %v167 = vpack.c.b16 %v159, %v155
    %v168 = vpack.c.b16 %v160, %v156
    %v169 = vpack.c.b16 %v161, %v157
    %v170 = vpack.c.b16 %v162, %v158
    %vm179 = vcmask 261120
    %v181 = vsel %vm179, %v138, 0
    %183 = vmatprep.subr.bf16.mxu0 %v164
    %184 = vmatpush1.bf16.msra.mxu0 %v163
    %185 = vmatprep.subr.bf16.mxu0 %v168
    %186 = vmatpush1.bf16.msra.mxu0 %v167
    %187 = vmatprep.subr.bf16.mxu0 0
    %188 = vmatpush1.bf16.msra.mxu0 0
    %189 = vmatprep.subr.bf16.mxu0 0
    %190 = vmatpush1.bf16.msra.mxu0 0
    %191 = vmatprep.subr.bf16.mxu0 0
    %192 = vmatpush1.bf16.msra.mxu0 0
    %193 = vmatprep.subr.bf16.mxu0 0
    %194 = vmatpush1.bf16.msra.mxu0 0
    %195 = vmatprep.subr.bf16.mxu0 0
    %196 = vmatpush1.bf16.msra.mxu0 0
    %197 = vmatprep.subr.bf16.mxu0 0
    %198 = vmatpush1.bf16.msra.mxu0 0
    %199 = vmatprep.subr.bf16.mxu0 0
    %200 = vmatpush1.bf16.msra.mxu0 0
    %201 = vmatprep.subr.bf16.mxu0 0
    %202 = vmatpush1.bf16.msra.mxu0 0
    %203 = vmatprep.subr.bf16.mxu0 0
    %204 = vmatpush1.bf16.msra.mxu0 0
    %205 = vmatprep.subr.bf16.mxu0 0
    %206 = vmatpush1.bf16.msra.mxu0 0
    %207 = vmatprep.subr.bf16.mxu0 0
    %208 = vmatpush1.bf16.msra.mxu0 0
    %209 = vmatprep.subr.bf16.mxu0 0
    %210 = vmatpush1.bf16.msra.mxu0 0
    %211 = vmatprep.subr.bf16.mxu0 0
    %212 = vmatpush1.bf16.msra.mxu0 0
    %213 = vmatprep.subr.bf16.mxu0 0
    %214 = vmatpush1.bf16.msra.mxu0 0
    %215 = vmatprep.mubr.bf16.mxu0 0
    %216 = vmatmul.mubr.bf16.gmra.mrb[0].mxu0 %v181
    %v217 = vpop.f32.mrb[0].mxu0
    %v218 = vadd.f32 %v117, %v217
    %v219 = vpop.f32.mrb[0].mxu0
    %v220 = vadd.f32 %v121, %v219
    %v221 = vpop.f32.mrb[0].mxu0
    %v222 = vadd.f32 %v117, %v221
    %v223 = vpop.f32.mrb[0].mxu0
    %v224 = vadd.f32 %v121, %v223
    %225 = vdwg.mxu0
    %226 = vmatprep.subr.bf16.mxu0 %v166
    %227 = vmatpush1.bf16.msra.mxu0 %v165
    %228 = vmatprep.subr.bf16.mxu0 %v170
    %229 = vmatpush1.bf16.msra.mxu0 %v169
    %230 = vmatprep.subr.bf16.mxu0 0
    %231 = vmatpush1.bf16.msra.mxu0 0
    %232 = vmatprep.subr.bf16.mxu0 0
    %233 = vmatpush1.bf16.msra.mxu0 0
    %234 = vmatprep.subr.bf16.mxu0 0
    %235 = vmatpush1.bf16.msra.mxu0 0
    %236 = vmatprep.subr.bf16.mxu0 0
    %237 = vmatpush1.bf16.msra.mxu0 0
    %238 = vmatprep.subr.bf16.mxu0 0
    %239 = vmatpush1.bf16.msra.mxu0 0
    %240 = vmatprep.subr.bf16.mxu0 0
    %241 = vmatpush1.bf16.msra.mxu0 0
    %242 = vmatprep.subr.bf16.mxu0 0
    %243 = vmatpush1.bf16.msra.mxu0 0
    %244 = vmatprep.subr.bf16.mxu0 0
    %245 = vmatpush1.bf16.msra.mxu0 0
    %246 = vmatprep.subr.bf16.mxu0 0
    %247 = vmatpush1.bf16.msra.mxu0 0
    %248 = vmatprep.subr.bf16.mxu0 0
    %249 = vmatpush1.bf16.msra.mxu0 0
    %250 = vmatprep.subr.bf16.mxu0 0
    %251 = vmatpush1.bf16.msra.mxu0 0
    %252 = vmatprep.subr.bf16.mxu0 0
    %253 = vmatpush1.bf16.msra.mxu0 0
    %254 = vmatprep.subr.bf16.mxu0 0
    %255 = vmatpush1.bf16.msra.mxu0 0
    %256 = vmatprep.subr.bf16.mxu0 0
    %257 = vmatpush1.bf16.msra.mxu0 0
    %258 = vmatprep.mubr.bf16.mxu0 0
    %259 = vmatmul.mubr.bf16.gmra.mrb[0].mxu0 %v181
    %v260 = vpop.f32.mrb[0].mxu0
    %v261 = vadd.f32 %v125, %v260
    %v262 = vpop.f32.mrb[0].mxu0
    %v263 = vadd.f32 %v129, %v262
    %v264 = vpop.f32.mrb[0].mxu0
    %v265 = vadd.f32 %v125, %v264
    %v266 = vpop.f32.mrb[0].mxu0
    %v267 = vadd.f32 %v129, %v266
    %268 = vdwg.mxu0
    %v269 = vmax.f32 %v218, 0.0
    %v270 = vmax.f32 %v220, 0.0
    %v271 = vmax.f32 %v261, 0.0
    %v272 = vmax.f32 %v263, 0.0
    %v273 = vmax.f32 %v222, 0.0
    %v274 = vmax.f32 %v224, 0.0
    %v275 = vmax.f32 %v265, 0.0
    %v276 = vmax.f32 %v267, 0.0
    %v277 = vpack.c.bf16 %v273, %v269
    %v278 = vpack.c.bf16 %v274, %v270
    %v279 = vpack.c.bf16 %v275, %v271
    %v280 = vpack.c.bf16 %v276, %v272
    %v281 = vld [vmem:[#allocation7] sm:$0xff]
    %v282 = vld [vmem:[#allocation7 + $0x8] sm:$0xff]
    %v283 = vld [vmem:[#allocation7 + $0x10] sm:$0xff]
    %v284 = vld [vmem:[#allocation7 + $0x18] sm:$0xff]
    %v285 = vld [vmem:[#allocation7 + $0x20] sm:$0xff]
    %v286 = vld [vmem:[#allocation7 + $0x28] sm:$0xff]
    %v287 = vld [vmem:[#allocation7 + $0x30] sm:$0xff]
    %v288 = vld [vmem:[#allocation7 + $0x38] sm:$0xff]
    %v289 = vld [vmem:[#allocation7 + $0x40] sm:$0xff]
    %v290 = vld [vmem:[#allocation7 + $0x48] sm:$0xff]
    %v291 = vld [vmem:[#allocation7 + $0x50] sm:$0xff]
    %v292 = vld [vmem:[#allocation7 + $0x58] sm:$0xff]
    %v293 = vld [vmem:[#allocation7 + $0x60] sm:$0xff]
    %v294 = vld [vmem:[#allocation7 + $0x68] sm:$0xff]
    %v295 = vld [vmem:[#allocation7 + $0x70] sm:$0xff]
    %v296 = vld [vmem:[#allocation7 + $0x78] sm:$0xff]
    %v297 = vld [vmem:[#allocation7 + $0x80] sm:$0xff]
    %v298 = vld [vmem:[#allocation7 + $0x88] sm:$0xff]
    %v299 = vld [vmem:[#allocation7 + $0x90] sm:$0xff]
    %v300 = vld [vmem:[#allocation7 + $0x98] sm:$0xff]
    %v301 = vld [vmem:[#allocation7 + $0xa0] sm:$0xff]
    %v302 = vld [vmem:[#allocation7 + $0xa8] sm:$0xff]
    %v303 = vld [vmem:[#allocation7 + $0xb0] sm:$0xff]
    %v304 = vld [vmem:[#allocation7 + $0xb8] sm:$0xff]
    %v305 = vld [vmem:[#allocation7 + $0xc0] sm:$0xff]
    %v306 = vld [vmem:[#allocation7 + $0xc8] sm:$0xff]
    %v307 = vld [vmem:[#allocation7 + $0xd0] sm:$0xff]
    %v308 = vld [vmem:[#allocation7 + $0xd8] sm:$0xff]
    %v309 = vld [vmem:[#allocation7 + $0xe0] sm:$0xff]
    %v310 = vld [vmem:[#allocation7 + $0xe8] sm:$0xff]
    %v311 = vld [vmem:[#allocation7 + $0xf0] sm:$0xff]
    %v312 = vld [vmem:[#allocation7 + $0xf8] sm:$0xff]
    %v313 = vld [vmem:[#allocation7 + $0x100] sm:$0xff]
    %v314 = vld [vmem:[#allocation7 + $0x108] sm:$0xff]
    %v315 = vld [vmem:[#allocation7 + $0x110] sm:$0xff]
    %v316 = vld [vmem:[#allocation7 + $0x118] sm:$0xff]
    %v317 = vld [vmem:[#allocation7 + $0x120] sm:$0xff]
    %v318 = vld [vmem:[#allocation7 + $0x128] sm:$0xff]
    %v319 = vld [vmem:[#allocation7 + $0x130] sm:$0xff]
    %v320 = vld [vmem:[#allocation7 + $0x138] sm:$0xff]
    %v321 = vld [vmem:[#allocation7 + $0x140] sm:$0xff]
    %v322 = vld [vmem:[#allocation7 + $0x148] sm:$0xff]
    %v323 = vld [vmem:[#allocation7 + $0x150] sm:$0xff]
    %v324 = vld [vmem:[#allocation7 + $0x158] sm:$0xff]
    %v325 = vld [vmem:[#allocation7 + $0x160] sm:$0xff]
    %v326 = vld [vmem:[#allocation7 + $0x168] sm:$0xff]
    %v327 = vld [vmem:[#allocation7 + $0x170] sm:$0xff]
    %v328 = vld [vmem:[#allocation7 + $0x178] sm:$0xff]
    %v329 = vld [vmem:[#allocation7 + $0x180] sm:$0xff]
    %v330 = vld [vmem:[#allocation7 + $0x188] sm:$0xff]
    %v331 = vld [vmem:[#allocation7 + $0x190] sm:$0xff]
    %v332 = vld [vmem:[#allocation7 + $0x198] sm:$0xff]
    %v333 = vld [vmem:[#allocation7 + $0x1a0] sm:$0xff]
    %v334 = vld [vmem:[#allocation7 + $0x1a8] sm:$0xff]
    %v335 = vld [vmem:[#allocation7 + $0x1b0] sm:$0xff]
    %v336 = vld [vmem:[#allocation7 + $0x1b8] sm:$0xff]
    %v337 = vld [vmem:[#allocation7 + $0x1c0] sm:$0xff]
    %v338 = vld [vmem:[#allocation7 + $0x1c8] sm:$0xff]
    %v339 = vld [vmem:[#allocation7 + $0x1d0] sm:$0xff]
    %v340 = vld [vmem:[#allocation7 + $0x1d8] sm:$0xff]
    %v341 = vld [vmem:[#allocation7 + $0x1e0] sm:$0xff]
    %v342 = vld [vmem:[#allocation7 + $0x1e8] sm:$0xff]
    %v343 = vld [vmem:[#allocation7 + $0x1f0] sm:$0xff]
    %v344 = vld [vmem:[#allocation7 + $0x1f8] sm:$0xff]
    %v345 = vld [vmem:[%s4] sm:$0x3]
    %v347 = vlaneseq
    %v348 = vshrl.u32 %v347, 7
    %v349 = vsub.s32 0, %v348
    %v350 = vrot.slane %v345, %v349
    %v351 = vlaneseq
    %v352 = vshrl.u32 %v351, 7
    %v353 = vsub.s32 1, %v352
    %v354 = vrot.slane %v345, %v353
    %v421 = vunpack.c.l.b16 %v281
    %v422 = vunpack.c.h.b16 %v281
    %v423 = vunpack.c.l.b16 %v282
    %v424 = vunpack.c.h.b16 %v282
    %v425 = vunpack.c.l.b16 %v283
    %v426 = vunpack.c.h.b16 %v283
    %v427 = vunpack.c.l.b16 %v284
    %v428 = vunpack.c.h.b16 %v284
    %v429 = vunpack.c.l.b16 %v285
    %v430 = vunpack.c.h.b16 %v285
    %v431 = vunpack.c.l.b16 %v286
    %v432 = vunpack.c.h.b16 %v286
    %v433 = vunpack.c.l.b16 %v287
    %v434 = vunpack.c.h.b16 %v287
    %v435 = vunpack.c.l.b16 %v288
    %v436 = vunpack.c.h.b16 %v288
    %v437 = vunpack.c.l.b16 %v289
    %v438 = vunpack.c.h.b16 %v289
    %v439 = vunpack.c.l.b16 %v290
    %v440 = vunpack.c.h.b16 %v290
    %v441 = vunpack.c.l.b16 %v291
    %v442 = vunpack.c.h.b16 %v291
    %v443 = vunpack.c.l.b16 %v292
    %v444 = vunpack.c.h.b16 %v292
    %v445 = vunpack.c.l.b16 %v293
    %v446 = vunpack.c.h.b16 %v293
    %v447 = vunpack.c.l.b16 %v294
    %v448 = vunpack.c.h.b16 %v294
    %v449 = vunpack.c.l.b16 %v295
    %v450 = vunpack.c.h.b16 %v295
    %v451 = vunpack.c.l.b16 %v296
    %v452 = vunpack.c.h.b16 %v296
    %v453 = vunpack.c.l.b16 %v297
    %v454 = vunpack.c.h.b16 %v297
    %v455 = vunpack.c.l.b16 %v298
    %v456 = vunpack.c.h.b16 %v298
    %v457 = vunpack.c.l.b16 %v299
    %v458 = vunpack.c.h.b16 %v299
    %v459 = vunpack.c.l.b16 %v300
    %v460 = vunpack.c.h.b16 %v300
    %v461 = vunpack.c.l.b16 %v301
    %v462 = vunpack.c.h.b16 %v301
    %v463 = vunpack.c.l.b16 %v302
    %v464 = vunpack.c.h.b16 %v302
    %v465 = vunpack.c.l.b16 %v303
    %v466 = vunpack.c.h.b16 %v303
    %v467 = vunpack.c.l.b16 %v304
    %v468 = vunpack.c.h.b16 %v304
    %v469 = vunpack.c.l.b16 %v305
    %v470 = vunpack.c.h.b16 %v305
    %v471 = vunpack.c.l.b16 %v306
    %v472 = vunpack.c.h.b16 %v306
    %v473 = vunpack.c.l.b16 %v307
    %v474 = vunpack.c.h.b16 %v307
    %v475 = vunpack.c.l.b16 %v308
    %v476 = vunpack.c.h.b16 %v308
    %v477 = vunpack.c.l.b16 %v309
    %v478 = vunpack.c.h.b16 %v309
    %v479 = vunpack.c.l.b16 %v310
    %v480 = vunpack.c.h.b16 %v310
    %v481 = vunpack.c.l.b16 %v311
    %v482 = vunpack.c.h.b16 %v311
    %v483 = vunpack.c.l.b16 %v312
    %v484 = vunpack.c.h.b16 %v312
    %v485 = vunpack.c.l.b16 %v313
    %v486 = vunpack.c.h.b16 %v313
    %v487 = vunpack.c.l.b16 %v314
    %v488 = vunpack.c.h.b16 %v314
    %v489 = vunpack.c.l.b16 %v315
    %v490 = vunpack.c.h.b16 %v315
    %v491 = vunpack.c.l.b16 %v316
    %v492 = vunpack.c.h.b16 %v316
    %v493 = vunpack.c.l.b16 %v317
    %v494 = vunpack.c.h.b16 %v317
    %v495 = vunpack.c.l.b16 %v318
    %v496 = vunpack.c.h.b16 %v318
    %v497 = vunpack.c.l.b16 %v319
    %v498 = vunpack.c.h.b16 %v319
    %v499 = vunpack.c.l.b16 %v320
    %v500 = vunpack.c.h.b16 %v320
    %v501 = vunpack.c.l.b16 %v321
    %v502 = vunpack.c.h.b16 %v321
    %v503 = vunpack.c.l.b16 %v322
    %v504 = vunpack.c.h.b16 %v322
    %v505 = vunpack.c.l.b16 %v323
    %v506 = vunpack.c.h.b16 %v323
    %v507 = vunpack.c.l.b16 %v324
    %v508 = vunpack.c.h.b16 %v324
    %v509 = vunpack.c.l.b16 %v325
    %v510 = vunpack.c.h.b16 %v325
    %v511 = vunpack.c.l.b16 %v326
    %v512 = vunpack.c.h.b16 %v326
    %v513 = vunpack.c.l.b16 %v327
    %v514 = vunpack.c.h.b16 %v327
    %v515 = vunpack.c.l.b16 %v328
    %v516 = vunpack.c.h.b16 %v328
    %v517 = vunpack.c.l.b16 %v329
    %v518 = vunpack.c.h.b16 %v329
    %v519 = vunpack.c.l.b16 %v330
    %v520 = vunpack.c.h.b16 %v330
    %v521 = vunpack.c.l.b16 %v331
    %v522 = vunpack.c.h.b16 %v331
    %v523 = vunpack.c.l.b16 %v332
    %v524 = vunpack.c.h.b16 %v332
    %v525 = vunpack.c.l.b16 %v333
    %v526 = vunpack.c.h.b16 %v333
    %v527 = vunpack.c.l.b16 %v334
    %v528 = vunpack.c.h.b16 %v334
    %v529 = vunpack.c.l.b16 %v335
    %v530 = vunpack.c.h.b16 %v335
    %v531 = vunpack.c.l.b16 %v336
    %v532 = vunpack.c.h.b16 %v336
    %v533 = vunpack.c.l.b16 %v337
    %v534 = vunpack.c.h.b16 %v337
    %v535 = vunpack.c.l.b16 %v338
    %v536 = vunpack.c.h.b16 %v338
    %v537 = vunpack.c.l.b16 %v339
    %v538 = vunpack.c.h.b16 %v339
    %v539 = vunpack.c.l.b16 %v340
    %v540 = vunpack.c.h.b16 %v340
    %v541 = vunpack.c.l.b16 %v341
    %v542 = vunpack.c.h.b16 %v341
    %v543 = vunpack.c.l.b16 %v342
    %v544 = vunpack.c.h.b16 %v342
    %v545 = vunpack.c.l.b16 %v343
    %v546 = vunpack.c.h.b16 %v343
    %v547 = vunpack.c.l.b16 %v344
    %v548 = vunpack.c.h.b16 %v344
    %v549 = vpack.c.b16 %v423, %v421
    %v550 = vpack.c.b16 %v424, %v422
    %v551 = vpack.c.b16 %v427, %v425
    %v552 = vpack.c.b16 %v428, %v426
    %v553 = vpack.c.b16 %v431, %v429
    %v554 = vpack.c.b16 %v432, %v430
    %v555 = vpack.c.b16 %v435, %v433
    %v556 = vpack.c.b16 %v436, %v434
    %v557 = vpack.c.b16 %v439, %v437
    %v558 = vpack.c.b16 %v440, %v438
    %v559 = vpack.c.b16 %v443, %v441
    %v560 = vpack.c.b16 %v444, %v442
    %v561 = vpack.c.b16 %v447, %v445
    %v562 = vpack.c.b16 %v448, %v446
    %v563 = vpack.c.b16 %v451, %v449
    %v564 = vpack.c.b16 %v452, %v450
    %v565 = vpack.c.b16 %v455, %v453
    %v566 = vpack.c.b16 %v456, %v454
    %v567 = vpack.c.b16 %v459, %v457
    %v568 = vpack.c.b16 %v460, %v458
    %v569 = vpack.c.b16 %v463, %v461
    %v570 = vpack.c.b16 %v464, %v462
    %v571 = vpack.c.b16 %v467, %v465
    %v572 = vpack.c.b16 %v468, %v466
    %v573 = vpack.c.b16 %v471, %v469
    %v574 = vpack.c.b16 %v472, %v470
    %v575 = vpack.c.b16 %v475, %v473
    %v576 = vpack.c.b16 %v476, %v474
    %v577 = vpack.c.b16 %v479, %v477
    %v578 = vpack.c.b16 %v480, %v478
    %v579 = vpack.c.b16 %v483, %v481
    %v580 = vpack.c.b16 %v484, %v482
    %v581 = vpack.c.b16 %v487, %v485
    %v582 = vpack.c.b16 %v488, %v486
    %v583 = vpack.c.b16 %v491, %v489
    %v584 = vpack.c.b16 %v492, %v490
    %v585 = vpack.c.b16 %v495, %v493
    %v586 = vpack.c.b16 %v496, %v494
    %v587 = vpack.c.b16 %v499, %v497
    %v588 = vpack.c.b16 %v500, %v498
    %v589 = vpack.c.b16 %v503, %v501
    %v590 = vpack.c.b16 %v504, %v502
    %v591 = vpack.c.b16 %v507, %v505
    %v592 = vpack.c.b16 %v508, %v506
    %v593 = vpack.c.b16 %v511, %v509
    %v594 = vpack.c.b16 %v512, %v510
    %v595 = vpack.c.b16 %v515, %v513
    %v596 = vpack.c.b16 %v516, %v514
    %v597 = vpack.c.b16 %v519, %v517
    %v598 = vpack.c.b16 %v520, %v518
    %v599 = vpack.c.b16 %v523, %v521
    %v600 = vpack.c.b16 %v524, %v522
    %v601 = vpack.c.b16 %v527, %v525
    %v602 = vpack.c.b16 %v528, %v526
    %v603 = vpack.c.b16 %v531, %v529
    %v604 = vpack.c.b16 %v532, %v530
    %v605 = vpack.c.b16 %v535, %v533
    %v606 = vpack.c.b16 %v536, %v534
    %v607 = vpack.c.b16 %v539, %v537
    %v608 = vpack.c.b16 %v540, %v538
    %v609 = vpack.c.b16 %v543, %v541
    %v610 = vpack.c.b16 %v544, %v542
    %v611 = vpack.c.b16 %v547, %v545
    %v612 = vpack.c.b16 %v548, %v546
    %677 = vmatprep.subr.bf16.mxu0 %v550
    %678 = vmatpush1.bf16.msra.mxu0 %v549
    %679 = vmatprep.subr.bf16.mxu0 %v552
    %680 = vmatpush1.bf16.msra.mxu0 %v551
    %681 = vmatprep.subr.bf16.mxu0 %v554
    %682 = vmatpush1.bf16.msra.mxu0 %v553
    %683 = vmatprep.subr.bf16.mxu0 %v556
    %684 = vmatpush1.bf16.msra.mxu0 %v555
    %685 = vmatprep.subr.bf16.mxu0 %v558
    %686 = vmatpush1.bf16.msra.mxu0 %v557
    %687 = vmatprep.subr.bf16.mxu0 %v560
    %688 = vmatpush1.bf16.msra.mxu0 %v559
    %689 = vmatprep.subr.bf16.mxu0 %v562
    %690 = vmatpush1.bf16.msra.mxu0 %v561
    %691 = vmatprep.subr.bf16.mxu0 %v564
    %692 = vmatpush1.bf16.msra.mxu0 %v563
    %693 = vmatprep.subr.bf16.mxu0 %v566
    %694 = vmatpush1.bf16.msra.mxu0 %v565
    %695 = vmatprep.subr.bf16.mxu0 %v568
    %696 = vmatpush1.bf16.msra.mxu0 %v567
    %697 = vmatprep.subr.bf16.mxu0 %v570
    %698 = vmatpush1.bf16.msra.mxu0 %v569
    %699 = vmatprep.subr.bf16.mxu0 %v572
    %700 = vmatpush1.bf16.msra.mxu0 %v571
    %701 = vmatprep.subr.bf16.mxu0 %v574
    %702 = vmatpush1.bf16.msra.mxu0 %v573
    %703 = vmatprep.subr.bf16.mxu0 %v576
    %704 = vmatpush1.bf16.msra.mxu0 %v575
    %705 = vmatprep.subr.bf16.mxu0 %v578
    %706 = vmatpush1.bf16.msra.mxu0 %v577
    %707 = vmatprep.subr.bf16.mxu0 %v580
    %708 = vmatpush1.bf16.msra.mxu0 %v579
    %709 = vmatprep.mubr.bf16.mxu0 %v278
    %710 = vmatmul.mubr.bf16.gmra.mrb[0].mxu0 %v277
    %v711 = vpop.f32.mrb[0].mxu0
    %v712 = vadd.f32 %v350, %v711
    %v713 = vpop.f32.mrb[0].mxu0
    %v714 = vadd.f32 %v354, %v713
    %v715 = vpop.f32.mrb[0].mxu0
    %v716 = vadd.f32 %v350, %v715
    %v717 = vpop.f32.mrb[0].mxu0
    %v718 = vadd.f32 %v354, %v717
    %719 = vdwg.mxu0
    %720 = vmatprep.subr.bf16.mxu0 %v582
    %721 = vmatpush1.bf16.msra.mxu0 %v581
    %722 = vmatprep.subr.bf16.mxu0 %v584
    %723 = vmatpush1.bf16.msra.mxu0 %v583
    %724 = vmatprep.subr.bf16.mxu0 %v586
    %725 = vmatpush1.bf16.msra.mxu0 %v585
    %726 = vmatprep.subr.bf16.mxu0 %v588
    %727 = vmatpush1.bf16.msra.mxu0 %v587
    %728 = vmatprep.subr.bf16.mxu0 %v590
    %729 = vmatpush1.bf16.msra.mxu0 %v589
    %730 = vmatprep.subr.bf16.mxu0 %v592
    %731 = vmatpush1.bf16.msra.mxu0 %v591
    %732 = vmatprep.subr.bf16.mxu0 %v594
    %733 = vmatpush1.bf16.msra.mxu0 %v593
    %734 = vmatprep.subr.bf16.mxu0 %v596
    %735 = vmatpush1.bf16.msra.mxu0 %v595
    %736 = vmatprep.subr.bf16.mxu0 %v598
    %737 = vmatpush1.bf16.msra.mxu0 %v597
    %738 = vmatprep.subr.bf16.mxu0 %v600
    %739 = vmatpush1.bf16.msra.mxu0 %v599
    %740 = vmatprep.subr.bf16.mxu0 %v602
    %741 = vmatpush1.bf16.msra.mxu0 %v601
    %742 = vmatprep.subr.bf16.mxu0 %v604
    %743 = vmatpush1.bf16.msra.mxu0 %v603
    %744 = vmatprep.subr.bf16.mxu0 %v606
    %745 = vmatpush1.bf16.msra.mxu0 %v605
    %746 = vmatprep.subr.bf16.mxu0 %v608
    %747 = vmatpush1.bf16.msra.mxu0 %v607
    %748 = vmatprep.subr.bf16.mxu0 %v610
    %749 = vmatpush1.bf16.msra.mxu0 %v609
    %750 = vmatprep.subr.bf16.mxu0 %v612
    %751 = vmatpush1.bf16.msra.mxu0 %v611
    %752 = vmatprep.mubr.bf16.mxu0 %v280
    %753 = vmatmul.mubr.bf16.gmra.mrb[0].mxu0 %v279
    %v754 = vpop.f32.mrb[0].mxu0
    %v755 = vadd.f32 %v712, %v754
    %v756 = vpop.f32.mrb[0].mxu0
    %v757 = vadd.f32 %v714, %v756
    %v758 = vpop.f32.mrb[0].mxu0
    %v759 = vadd.f32 %v716, %v758
    %v760 = vpop.f32.mrb[0].mxu0
    %v761 = vadd.f32 %v718, %v760
    %762 = vdwg.mxu0
    %v763 = vmax.f32 %v755, 0.0
    %v764 = vmax.f32 %v757, 0.0
    %v765 = vmax.f32 %v759, 0.0
    %v766 = vmax.f32 %v761, 0.0
    %v767 = vpack.c.bf16 %v765, %v763
    %v768 = vpack.c.bf16 %v766, %v764
    %v769 = vld [vmem:[#allocation8] sm:$0xf]
    %v770 = vld [vmem:[#allocation8 + $0x4] sm:$0xf]
    %v771 = vld [vmem:[#allocation8 + $0x8] sm:$0xf]
    %v772 = vld [vmem:[#allocation8 + $0xc] sm:$0xf]
    %v773 = vld [vmem:[#allocation8 + $0x10] sm:$0xf]
    %v774 = vld [vmem:[#allocation8 + $0x14] sm:$0xf]
    %v775 = vld [vmem:[#allocation8 + $0x18] sm:$0xf]
    %v776 = vld [vmem:[#allocation8 + $0x1c] sm:$0xf]
    %v777 = vld [vmem:[#allocation8 + $0x20] sm:$0xf]
    %v778 = vld [vmem:[#allocation8 + $0x24] sm:$0xf]
    %v779 = vld [vmem:[#allocation8 + $0x28] sm:$0xf]
    %v780 = vld [vmem:[#allocation8 + $0x2c] sm:$0xf]
    %v781 = vld [vmem:[#allocation8 + $0x30] sm:$0xf]
    %v782 = vld [vmem:[#allocation8 + $0x34] sm:$0xf]
    %v783 = vld [vmem:[#allocation8 + $0x38] sm:$0xf]
    %v784 = vld [vmem:[#allocation8 + $0x3c] sm:$0xf]
    %v785 = vld [vmem:[#allocation8 + $0x40] sm:$0xf]
    %v786 = vld [vmem:[#allocation8 + $0x44] sm:$0xf]
    %v787 = vld [vmem:[#allocation8 + $0x48] sm:$0xf]
    %v788 = vld [vmem:[#allocation8 + $0x4c] sm:$0xf]
    %v789 = vld [vmem:[#allocation8 + $0x50] sm:$0xf]
    %v790 = vld [vmem:[#allocation8 + $0x54] sm:$0xf]
    %v791 = vld [vmem:[#allocation8 + $0x58] sm:$0xf]
    %v792 = vld [vmem:[#allocation8 + $0x5c] sm:$0xf]
    %v793 = vld [vmem:[#allocation8 + $0x60] sm:$0xf]
    %v794 = vld [vmem:[#allocation8 + $0x64] sm:$0xf]
    %v795 = vld [vmem:[#allocation8 + $0x68] sm:$0xf]
    %v796 = vld [vmem:[#allocation8 + $0x6c] sm:$0xf]
    %v797 = vld [vmem:[#allocation8 + $0x70] sm:$0xf]
    %v798 = vld [vmem:[#allocation8 + $0x74] sm:$0xf]
    %v799 = vld [vmem:[#allocation8 + $0x78] sm:$0xf]
    %v800 = vld [vmem:[#allocation8 + $0x7c] sm:$0xf]
    %v801 = vld [vmem:[%s6] sm:$0x1]
    %v803 = vlaneseq
    %v804 = vshrl.u32 %v803, 7
    %v805 = vsub.s32 0, %v804
    %v806 = vrot.slane %v801, %v805
    %v840 = vunpack.c.l.b16 %v769
    %v841 = vunpack.c.l.b16 %v770
    %v842 = vunpack.c.l.b16 %v771
    %v843 = vunpack.c.l.b16 %v772
    %v844 = vunpack.c.l.b16 %v773
    %v845 = vunpack.c.l.b16 %v774
    %v846 = vunpack.c.l.b16 %v775
    %v847 = vunpack.c.l.b16 %v776
    %v848 = vunpack.c.l.b16 %v777
    %v849 = vunpack.c.l.b16 %v778
    %v850 = vunpack.c.l.b16 %v779
    %v851 = vunpack.c.l.b16 %v780
    %v852 = vunpack.c.l.b16 %v781
    %v853 = vunpack.c.l.b16 %v782
    %v854 = vunpack.c.l.b16 %v783
    %v855 = vunpack.c.l.b16 %v784
    %v856 = vunpack.c.l.b16 %v785
    %v857 = vunpack.c.l.b16 %v786
    %v858 = vunpack.c.l.b16 %v787
    %v859 = vunpack.c.l.b16 %v788
    %v860 = vunpack.c.l.b16 %v789
    %v861 = vunpack.c.l.b16 %v790
    %v862 = vunpack.c.l.b16 %v791
    %v863 = vunpack.c.l.b16 %v792
    %v864 = vunpack.c.l.b16 %v793
    %v865 = vunpack.c.l.b16 %v794
    %v866 = vunpack.c.l.b16 %v795
    %v867 = vunpack.c.l.b16 %v796
    %v868 = vunpack.c.l.b16 %v797
    %v869 = vunpack.c.l.b16 %v798
    %v870 = vunpack.c.l.b16 %v799
    %v871 = vunpack.c.l.b16 %v800
    %v872 = vpack.c.b16 %v841, %v840
    %v873 = vpack.c.b16 %v843, %v842
    %v874 = vpack.c.b16 %v845, %v844
    %v875 = vpack.c.b16 %v847, %v846
    %v876 = vpack.c.b16 %v849, %v848
    %v877 = vpack.c.b16 %v851, %v850
    %v878 = vpack.c.b16 %v853, %v852
    %v879 = vpack.c.b16 %v855, %v854
    %v880 = vpack.c.b16 %v857, %v856
    %v881 = vpack.c.b16 %v859, %v858
    %v882 = vpack.c.b16 %v861, %v860
    %v883 = vpack.c.b16 %v863, %v862
    %v884 = vpack.c.b16 %v865, %v864
    %v885 = vpack.c.b16 %v867, %v866
    %v886 = vpack.c.b16 %v869, %v868
    %v887 = vpack.c.b16 %v871, %v870
    %904 = vmatprep.subr.bf16.mxu0 0
    %905 = vmatpush1.bf16.msra.mxu0 %v872
    %906 = vmatprep.subr.bf16.mxu0 0
    %907 = vmatpush1.bf16.msra.mxu0 %v873
    %908 = vmatprep.subr.bf16.mxu0 0
    %909 = vmatpush1.bf16.msra.mxu0 %v874
    %910 = vmatprep.subr.bf16.mxu0 0
    %911 = vmatpush1.bf16.msra.mxu0 %v875
    %912 = vmatprep.subr.bf16.mxu0 0
    %913 = vmatpush1.bf16.msra.mxu0 %v876
    %914 = vmatprep.subr.bf16.mxu0 0
    %915 = vmatpush1.bf16.msra.mxu0 %v877
    %916 = vmatprep.subr.bf16.mxu0 0
    %917 = vmatpush1.bf16.msra.mxu0 %v878
    %918 = vmatprep.subr.bf16.mxu0 0
    %919 = vmatpush1.bf16.msra.mxu0 %v879
    %920 = vmatprep.subr.bf16.mxu0 0
    %921 = vmatpush1.bf16.msra.mxu0 %v880
    %922 = vmatprep.subr.bf16.mxu0 0
    %923 = vmatpush1.bf16.msra.mxu0 %v881
    %924 = vmatprep.subr.bf16.mxu0 0
    %925 = vmatpush1.bf16.msra.mxu0 %v882
    %926 = vmatprep.subr.bf16.mxu0 0
    %927 = vmatpush1.bf16.msra.mxu0 %v883
    %928 = vmatprep.subr.bf16.mxu0 0
    %929 = vmatpush1.bf16.msra.mxu0 %v884
    %930 = vmatprep.subr.bf16.mxu0 0
    %931 = vmatpush1.bf16.msra.mxu0 %v885
    %932 = vmatprep.subr.bf16.mxu0 0
    %933 = vmatpush1.bf16.msra.mxu0 %v886
    %934 = vmatprep.subr.bf16.mxu0 0
    %935 = vmatpush1.bf16.msra.mxu0 %v887
    %936 = vmatprep.mubr.bf16.mxu0 %v768
    %937 = vmatmul.mubr.bf16.gmra.mrb[0].mxu0 %v767
    %v938 = vpop.f32.mrb[0].mxu0
    %v939 = vadd.f32 %v806, %v938
    %v940 = vpop.f32.mrb[0].mxu0
    %v941 = vpop.f32.mrb[0].mxu0
    %v942 = vadd.f32 %v806, %v941
    %v943 = vpop.f32.mrb[0].mxu0
    %944 = vdwg.mxu0
    %v945 = vmax.f32 %v939, 0.0
    %v946 = vmax.f32 %v942, 0.0
    %v947 = vpack.c.bf16 %v946, %v945
    %v948 = vld [vmem:[#allocation10] sm:$0xf]
    %v949 = vld [vmem:[#allocation10 + $0x4] sm:$0xf]
    %v950 = vld [vmem:[#allocation10 + $0x8] sm:$0xf]
    %v951 = vld [vmem:[#allocation10 + $0xc] sm:$0xf]
    %v952 = vld [vmem:[#allocation10 + $0x10] sm:$0xf]
    %v953 = vld [vmem:[#allocation10 + $0x14] sm:$0xf]
    %v954 = vld [vmem:[#allocation10 + $0x18] sm:$0xf]
    %v955 = vld [vmem:[#allocation10 + $0x1c] sm:$0xf]
    %v956 = vld [vmem:[#allocation10 + $0x20] sm:$0xf]
    %v957 = vld [vmem:[#allocation10 + $0x24] sm:$0xf]
    %v958 = vld [vmem:[#allocation10 + $0x28] sm:$0xf]
    %v959 = vld [vmem:[#allocation10 + $0x2c] sm:$0xf]
    %v960 = vld [vmem:[#allocation10 + $0x30] sm:$0xf]
    %v961 = vld [vmem:[#allocation10 + $0x34] sm:$0xf]
    %v962 = vld [vmem:[#allocation10 + $0x38] sm:$0xf]
    %v963 = vld [vmem:[#allocation10 + $0x3c] sm:$0xf]
    %v964 = vld [vmem:[%s8] sm:$0x1]
    %v966 = vlaneseq
    %v967 = vshrl.u32 %v966, 7
    %v968 = vsub.s32 0, %v967
    %v969 = vrot.slane %v964, %v968
    %v987 = vunpack.c.l.b16 %v948
    %v988 = vunpack.c.l.b16 %v949
    %v989 = vunpack.c.l.b16 %v950
    %v990 = vunpack.c.l.b16 %v951
    %v991 = vunpack.c.l.b16 %v952
    %v992 = vunpack.c.l.b16 %v953
    %v993 = vunpack.c.l.b16 %v954
    %v994 = vunpack.c.l.b16 %v955
    %v995 = vunpack.c.l.b16 %v956
    %v996 = vunpack.c.l.b16 %v957
    %v997 = vunpack.c.l.b16 %v958
    %v998 = vunpack.c.l.b16 %v959
    %v999 = vunpack.c.l.b16 %v960
    %v1000 = vunpack.c.l.b16 %v961
    %v1001 = vunpack.c.l.b16 %v962
    %v1002 = vunpack.c.l.b16 %v963
    %v1003 = vpack.c.b16 %v988, %v987
    %v1004 = vpack.c.b16 %v990, %v989
    %v1005 = vpack.c.b16 %v992, %v991
    %v1006 = vpack.c.b16 %v994, %v993
    %v1007 = vpack.c.b16 %v996, %v995
    %v1008 = vpack.c.b16 %v998, %v997
    %v1009 = vpack.c.b16 %v1000, %v999
    %v1010 = vpack.c.b16 %v1002, %v1001
    %1019 = vmatprep.subr.bf16.mxu0 0
    %1020 = vmatpush1.bf16.msra.mxu0 %v1003
    %1021 = vmatprep.subr.bf16.mxu0 0
    %1022 = vmatpush1.bf16.msra.mxu0 %v1004
    %1023 = vmatprep.subr.bf16.mxu0 0
    %1024 = vmatpush1.bf16.msra.mxu0 %v1005
    %1025 = vmatprep.subr.bf16.mxu0 0
    %1026 = vmatpush1.bf16.msra.mxu0 %v1006
    %1027 = vmatprep.subr.bf16.mxu0 0
    %1028 = vmatpush1.bf16.msra.mxu0 %v1007
    %1029 = vmatprep.subr.bf16.mxu0 0
    %1030 = vmatpush1.bf16.msra.mxu0 %v1008
    %1031 = vmatprep.subr.bf16.mxu0 0
    %1032 = vmatpush1.bf16.msra.mxu0 %v1009
    %1033 = vmatprep.subr.bf16.mxu0 0
    %1034 = vmatpush1.bf16.msra.mxu0 %v1010
    %1035 = vmatprep.subr.bf16.mxu0 0
    %1036 = vmatpush1.bf16.msra.mxu0 0
    %1037 = vmatprep.subr.bf16.mxu0 0
    %1038 = vmatpush1.bf16.msra.mxu0 0
    %1039 = vmatprep.subr.bf16.mxu0 0
    %1040 = vmatpush1.bf16.msra.mxu0 0
    %1041 = vmatprep.subr.bf16.mxu0 0
    %1042 = vmatpush1.bf16.msra.mxu0 0
    %1043 = vmatprep.subr.bf16.mxu0 0
    %1044 = vmatpush1.bf16.msra.mxu0 0
    %1045 = vmatprep.subr.bf16.mxu0 0
    %1046 = vmatpush1.bf16.msra.mxu0 0
    %1047 = vmatprep.subr.bf16.mxu0 0
    %1048 = vmatpush1.bf16.msra.mxu0 0
    %1049 = vmatprep.subr.bf16.mxu0 0
    %1050 = vmatpush1.bf16.msra.mxu0 0
    %1051 = vmatprep.mubr.bf16.mxu0 0
    %1052 = vmatmul.mubr.bf16.gmra.mrb[0].mxu0 %v947
    %v1053 = vpop.f32.mrb[0].mxu0
    %v1054 = vadd.f32 %v969, %v1053
    %v1055 = vpop.f32.mrb[0].mxu0
    %v1056 = vpop.f32.mrb[0].mxu0
    %v1057 = vadd.f32 %v969, %v1056
    %v1058 = vpop.f32.mrb[0].mxu0
    %1059 = vdwg.mxu0
    %1060 = vst [vmem:[#allocation11] sm:$0xff] %v1054
    %1061 = vst [vmem:[#allocation11 + $0x8] sm:$0xff] %v1057
    // Predicated region
    $region58: #{tpu_custom_call.1} parent=1 // pred_check
      _
    $region59: #{tpu_custom_call.1} parent=1 // pred_check_branch
      %1063 = sbr.rel (0) target = $region61
    $region60: #{tpu_custom_call.1} parent=1 // pred_region
      %s1065 = ssub.s32 256, 256
      %1066 = vsyncadd [#allocation4], %s1065
      %s1067 = sshll.u32 [#allocation11], 4
      %s1068 = int_to_ptr.vmem [resolvable:$true] %s1067
      %1073 = dma.vmem_to_hbm [thread:$0]  %s1068, 256, %s9, [#allocation4], 128, 128, 8
    $region61: #{tpu_custom_call.1} parent=1 // pred_fallthru
      _
    // Predicated region
    $region62: #{tpu_custom_call.1} parent=1 // pred_check
      _
    $region63: #{tpu_custom_call.1} parent=1 // pred_check_branch
      %1075 = sbr.rel (0) target = $region65
    $region64: #{tpu_custom_call.1} parent=1 // pred_region
      %1076 = dma.done [#allocation4], 256
    $region65: #{tpu_custom_call.1} parent=1 // pred_fallthru
      _
    %1077 = vsyncpa [#allocation3], 1
    %1078 = vsyncpa [#allocation6], 1
    %1079 = vsyncpa [#allocation9], 1
    %1080 = vsyncpa [#allocation4], 1

</llo_original>
